<compile_context>
chip_gen: v7x
topology: tpu7x:2x2x1
jax: 0.10.0
libtpu: 0.0.40
codegen_flags: <defaults>
</compile_context>

<pallas_src>
import functools

import jax
import jax.numpy as jnp
from jax.experimental import pallas as pl
from jax.experimental.pallas import tpu as pltpu

_LANE = 128  # lane-dense padded width for every feature dimension


def _mlp_kernel(x_ref, w0_ref, b0_ref, w1_ref, b1_ref, w2_ref, b2_ref, o_ref):
    """Fused MLP forward for one batch tile.

    x_ref : (TB, image_size)      bf16
    w0_ref: (image_size, 128)     bf16    b0_ref: (1, 128)  f32 (pad cols = 0)
    w1_ref: (128, 128)            f32     b1_ref: (1, 128)  f32 (pad cols = 0)
    w2_ref: (128, 128)            f32     b2_ref: (1, 128)  f32 (pad cols = -1e30)
    o_ref : (TB, 128)             f32 log-softmax (only first 10 cols meaningful)
    """
    # fc0 + ReLU: bf16 x bf16 on the MXU, f32 accumulation.
    h0 = jnp.dot(x_ref[...], w0_ref[...], preferred_element_type=jnp.float32)
    h0 = jnp.maximum(h0 + b0_ref[...], 0.0)

    # fc1 + ReLU (tiny; keep f32 — v5e VPU/EUP have no bf16 path).
    h1 = jnp.dot(h0, w1_ref[...], preferred_element_type=jnp.float32)
    h1 = jnp.maximum(h1 + b1_ref[...], 0.0)

    # fc2 (lane-dense 128 logit columns, padded classes get bias -1e30).
    z = jnp.dot(h1, w2_ref[...], preferred_element_type=jnp.float32) + b2_ref[...]

    # Numerically-stable log_softmax along the last axis.  Padded logits are
    # ~-1e30 -> exp underflows to 0, so the result matches the 10-class case.
    m = jnp.max(z, axis=-1, keepdims=True)
    shifted = z - m
    lse = jnp.log(jnp.sum(jnp.exp(shifted), axis=-1, keepdims=True))
    o_ref[...] = (shifted - lse).astype(o_ref.dtype)


def _pad_cols(a, width, fill=0.0):
    """Pad a 2-D array's last dim up to `width` with `fill`."""
    out = jnp.full((a.shape[0], width), fill, jnp.float32)
    return out.at[:, : a.shape[1]].set(a.astype(jnp.float32))


def _pad_rows(a, height):
    """Pad a 2-D array's first dim up to `height` with zeros."""
    out = jnp.zeros((height, a.shape[1]), a.dtype)
    return out.at[: a.shape[0], :].set(a)


@functools.partial(jax.jit, static_argnames=("image_size", "block_b"))
def model_a_forward(x, params, *, image_size, block_b=1024):
    """Equivalent of ModelA.forward. x may have any leading shape; it is
    flattened to (-1, image_size) like torch's x.view(-1, image_size)."""
    w0, b0, w1, b1, w2, b2 = params
    fc2_size = w2.shape[1]

    x2d = x.reshape(-1, image_size)
    B = x2d.shape[0]

    # bf16 for the dominant HBM stream (x) and the first-layer weights.
    x2d = x2d.astype(jnp.bfloat16)

    # Lane-dense padded parameters.  Hidden-layer padding (zero weight cols /
    # rows, zero bias) is exactly neutral through ReLU; the final layer's
    # padded classes get bias -1e30 so they never affect log_softmax.
    w0_p = _pad_cols(w0, _LANE).astype(jnp.bfloat16)           # (image_size, 128)
    b0_p = _pad_cols(b0, _LANE)                                # (1, 128)
    w1_p = _pad_rows(_pad_cols(w1, _LANE), _LANE)              # (128, 128)
    b1_p = _pad_cols(b1, _LANE)                                # (1, 128)
    w2_p = _pad_rows(_pad_cols(w2, _LANE), _LANE)              # (128, 128)
    b2_p = _pad_cols(b2, _LANE, fill=-1e30)                    # (1, 128)

    # Handle arbitrary batch sizes: pad up to a multiple of block_b.
    n_blocks = pl.cdiv(B, block_b)
    B_pad = n_blocks * block_b
    if B_pad != B:
        x2d = jnp.pad(x2d, ((0, B_pad - B), (0, 0)))

    out = pl.pallas_call(
        _mlp_kernel,
        out_shape=jax.ShapeDtypeStruct((B_pad, _LANE), jnp.float32),
        grid_spec=pltpu.PrefetchScalarGridSpec(
            num_scalar_prefetch=0,
            grid=(n_blocks,),
            in_specs=[
                # activations: tiled over batch
                pl.BlockSpec((block_b, image_size), lambda i: (i, 0)),
                # weights / biases: full arrays, constant index (resident)
                pl.BlockSpec(w0_p.shape, lambda i: (0, 0)),
                pl.BlockSpec(b0_p.shape, lambda i: (0, 0)),
                pl.BlockSpec(w1_p.shape, lambda i: (0, 0)),
                pl.BlockSpec(b1_p.shape, lambda i: (0, 0)),
                pl.BlockSpec(w2_p.shape, lambda i: (0, 0)),
                pl.BlockSpec(b2_p.shape, lambda i: (0, 0)),
            ],
            out_specs=pl.BlockSpec((block_b, _LANE), lambda i: (i, 0)),
        ),
        compiler_params=pltpu.CompilerParams(
            dimension_semantics=("parallel",),
            vmem_limit_bytes=64 << 20,
        ),
    )(x2d, w0_p, b0_p, w1_p, b1_p, w2_p, b2_p)

    # Strip batch padding and the 118 padded classes.
    return out[:B, :fc2_size]


def init_params(key, image_size, fc0_size=100, fc1_size=50, fc2_size=10):
    """Deterministic parameter init (uniform, roughly matching torch's Linear
    default scale 1/sqrt(fan_in)). Weights stored as [in, out]."""
    ks = jax.random.split(key, 6)

    def lin(kw, kb, fan_in, fan_out):
        bound = 1.0 / jnp.sqrt(float(fan_in))
        w = jax.random.uniform(kw, (fan_in, fan_out), jnp.float32, -bound, bound)
        b = jax.random.uniform(kb, (1, fan_out), jnp.float32, -bound, bound)
        return w, b

    w0, b0 = lin(ks[0], ks[1], image_size, fc0_size)
    w1, b1 = lin(ks[2], ks[3], fc0_size, fc1_size)
    w2, b2 = lin(ks[4], ks[5], fc1_size, fc2_size)
    return (w0, b0, w1, b1, w2, b2)


def _reference_forward(x, params, image_size):
    """Pure-JAX reference with the same bf16 input/first-layer precision."""
    w0, b0, w1, b1, w2, b2 = params
    x2d = x.reshape(-1, image_size).astype(jnp.bfloat16)
    h0 = jax.nn.relu(
        jnp.dot(x2d, w0.astype(jnp.bfloat16), preferred_element_type=jnp.float32)
        + b0)
    h1 = jax.nn.relu(jnp.dot(h0, w1) + b1)
    z = jnp.dot(h1, w2) + b2
    return jax.nn.log_softmax(z, axis=-1)


if __name__ == "__main__":
    key = jax.random.PRNGKey(0)
    k_x, k_p = jax.random.split(key)

    image_size = 784  # MNIST-style 28*28, matching ModelA's intended use
    batch = 300       # deliberately NOT a multiple of block_b (tail handling)
    block_b = 256     # -> grid of 2 parallel steps (both v7x TCs busy)

    # Input like MNIST images (B, 1, 28, 28); forward flattens to (B, 784).
    x = jax.random.normal(k_x, (batch, 1, 28, 28), dtype=jnp.float32)
    params = init_params(k_p, image_size)

    out = model_a_forward(x, params, image_size=image_size, block_b=block_b)
    out = jax.block_until_ready(out)

    # sanity 1: shape and log_softmax rows (log-)sum to ~0
    assert out.shape == (batch, 10)
    row_logsumexp = jax.scipy.special.logsumexp(out, axis=-1)
    assert jnp.max(jnp.abs(row_logsumexp)) < 1e-4

    # sanity 2: matches pure-JAX reference at matching precision
    ref = _reference_forward(x, params, image_size)
    assert jnp.allclose(out, ref, atol=2e-2, rtol=2e-2)

    print("KERNEL_OK")
</pallas_src>

<mosaic_0001>
module attributes {stable_mosaic.version = 11 : i64} {
  func.func @_mlp_kernel(%arg0: i32, %arg1: memref<256x784xbf16, #tpu.memory_space<vmem>>, %arg2: memref<784x128xbf16, #tpu.memory_space<vmem>>, %arg3: memref<1x128xf32, #tpu.memory_space<vmem>>, %arg4: memref<128x128xf32, #tpu.memory_space<vmem>>, %arg5: memref<1x128xf32, #tpu.memory_space<vmem>>, %arg6: memref<128x128xf32, #tpu.memory_space<vmem>>, %arg7: memref<1x128xf32, #tpu.memory_space<vmem>>, %arg8: memref<256x128xf32, #tpu.memory_space<vmem>>) attributes {dimension_semantics = [#tpu.dimension_semantics<parallel>], iteration_bounds = array<i64: 2>, scalar_prefetch = 0 : i64, scratch_operands = 0 : i64, tpu.core_type = #tpu.core_type<tc>, window_params = [{transform_indices = @transform_0, window_bounds = array<i64: 256, 784>}, {pipeline_mode = #tpu.pipeline_mode<synchronous>, transform_indices = @transform_1, window_bounds = array<i64: 784, 128>}, {pipeline_mode = #tpu.pipeline_mode<synchronous>, transform_indices = @transform_2, window_bounds = array<i64: 1, 128>}, {pipeline_mode = #tpu.pipeline_mode<synchronous>, transform_indices = @transform_3, window_bounds = array<i64: 128, 128>}, {pipeline_mode = #tpu.pipeline_mode<synchronous>, transform_indices = @transform_4, window_bounds = array<i64: 1, 128>}, {pipeline_mode = #tpu.pipeline_mode<synchronous>, transform_indices = @transform_5, window_bounds = array<i64: 128, 128>}, {pipeline_mode = #tpu.pipeline_mode<synchronous>, transform_indices = @transform_6, window_bounds = array<i64: 1, 128>}, {transform_indices = @transform_7, window_bounds = array<i64: 256, 128>}]} {
    %c0 = arith.constant 0 : index
    %c0_0 = arith.constant 0 : index
    %0 = vector.load %arg1[%c0, %c0_0] : memref<256x784xbf16, #tpu.memory_space<vmem>>, vector<256x784xbf16>
    %c0_1 = arith.constant 0 : index
    %c0_2 = arith.constant 0 : index
    %1 = vector.load %arg2[%c0_1, %c0_2] : memref<784x128xbf16, #tpu.memory_space<vmem>>, vector<784x128xbf16>
    %cst = arith.constant dense<0.000000e+00> : vector<256x128xf32>
    %2 = tpu.matmul %0, %1, %cst {dimension_numbers = #tpu.dot_dimension_numbers<[1], [0], [0], [1], [0, 0, 1, 1], [], []>} : vector<256x784xbf16>, vector<784x128xbf16>, vector<256x128xf32> -> vector<256x128xf32>
    %c0_3 = arith.constant 0 : index
    %c0_4 = arith.constant 0 : index
    %3 = vector.load %arg3[%c0_3, %c0_4] : memref<1x128xf32, #tpu.memory_space<vmem>>, vector<1x128xf32>
    %4 = vector.broadcast %3 : vector<1x128xf32> to vector<256x128xf32>
    %5 = arith.addf %2, %4 : vector<256x128xf32>
    %cst_5 = arith.constant 0.000000e+00 : f32
    %6 = vector.broadcast %cst_5 : f32 to vector<256x128xf32>
    %7 = arith.maximumf %5, %6 : vector<256x128xf32>
    %c0_6 = arith.constant 0 : index
    %c0_7 = arith.constant 0 : index
    %8 = vector.load %arg4[%c0_6, %c0_7] : memref<128x128xf32, #tpu.memory_space<vmem>>, vector<128x128xf32>
    %cst_8 = arith.constant dense<0.000000e+00> : vector<256x128xf32>
    %9 = tpu.matmul %7, %8, %cst_8 {dimension_numbers = #tpu.dot_dimension_numbers<[1], [0], [0], [1], [0, 0, 1, 1], [], []>} : vector<256x128xf32>, vector<128x128xf32>, vector<256x128xf32> -> vector<256x128xf32>
    %c0_9 = arith.constant 0 : index
    %c0_10 = arith.constant 0 : index
    %10 = vector.load %arg5[%c0_9, %c0_10] : memref<1x128xf32, #tpu.memory_space<vmem>>, vector<1x128xf32>
    %11 = vector.broadcast %10 : vector<1x128xf32> to vector<256x128xf32>
    %12 = arith.addf %9, %11 : vector<256x128xf32>
    %cst_11 = arith.constant 0.000000e+00 : f32
    %13 = vector.broadcast %cst_11 : f32 to vector<256x128xf32>
    %14 = arith.maximumf %12, %13 : vector<256x128xf32>
    %c0_12 = arith.constant 0 : index
    %c0_13 = arith.constant 0 : index
    %15 = vector.load %arg6[%c0_12, %c0_13] : memref<128x128xf32, #tpu.memory_space<vmem>>, vector<128x128xf32>
    %cst_14 = arith.constant dense<0.000000e+00> : vector<256x128xf32>
    %16 = tpu.matmul %14, %15, %cst_14 {dimension_numbers = #tpu.dot_dimension_numbers<[1], [0], [0], [1], [0, 0, 1, 1], [], []>} : vector<256x128xf32>, vector<128x128xf32>, vector<256x128xf32> -> vector<256x128xf32>
    %c0_15 = arith.constant 0 : index
    %c0_16 = arith.constant 0 : index
    %17 = vector.load %arg7[%c0_15, %c0_16] : memref<1x128xf32, #tpu.memory_space<vmem>>, vector<1x128xf32>
    %18 = vector.broadcast %17 : vector<1x128xf32> to vector<256x128xf32>
    %19 = arith.addf %16, %18 : vector<256x128xf32>
    %cst_17 = arith.constant dense<0xFF800000> : vector<256xf32>
    %20 = vector.multi_reduction <maximumf>, %19, %cst_17 [1] : vector<256x128xf32> to vector<256xf32>
    %21 = vector.shape_cast %20 : vector<256xf32> to vector<256x1xf32>
    %22 = vector.broadcast %21 : vector<256x1xf32> to vector<256x128xf32>
    %23 = arith.subf %19, %22 : vector<256x128xf32>
    %24 = math.exp %23 : vector<256x128xf32>
    %cst_18 = arith.constant dense<0.000000e+00> : vector<256xf32>
    %25 = vector.multi_reduction <add>, %24, %cst_18 [1] : vector<256x128xf32> to vector<256xf32>
    %26 = vector.shape_cast %25 : vector<256xf32> to vector<256x1xf32>
    %27 = math.log %26 : vector<256x1xf32>
    %28 = vector.broadcast %27 : vector<256x1xf32> to vector<256x128xf32>
    %29 = arith.subf %23, %28 : vector<256x128xf32>
    %c0_19 = arith.constant 0 : index
    %c0_20 = arith.constant 0 : index
    %30 = vector.load %arg8[%c0_19, %c0_20] : memref<256x128xf32, #tpu.memory_space<vmem>>, vector<256x128xf32>
    tpu.vector_store %arg8[%c0_19, %c0_20], %29 {strides = array<i32>} : memref<256x128xf32, #tpu.memory_space<vmem>>, vector<256x128xf32>,
    return
  }
  func.func @transform_0(%arg0: i32) -> (i32, i32) {
    %c0_i32 = arith.constant 0 : i32
    %c0_i32_0 = arith.constant 0 : i32
    return %arg0, %c0_i32 : i32, i32
  }
  func.func @transform_1(%arg0: i32) -> (i32, i32) {
    %c0_i32 = arith.constant 0 : i32
    %c0_i32_0 = arith.constant 0 : i32
    %c0_i32_1 = arith.constant 0 : i32
    return %c0_i32, %c0_i32_0 : i32, i32
  }
  func.func @transform_2(%arg0: i32) -> (i32, i32) {
    %c0_i32 = arith.constant 0 : i32
    %c0_i32_0 = arith.constant 0 : i32
    %c0_i32_1 = arith.constant 0 : i32
    return %c0_i32, %c0_i32_0 : i32, i32
  }
  func.func @transform_3(%arg0: i32) -> (i32, i32) {
    %c0_i32 = arith.constant 0 : i32
    %c0_i32_0 = arith.constant 0 : i32
    %c0_i32_1 = arith.constant 0 : i32
    return %c0_i32, %c0_i32_0 : i32, i32
  }
  func.func @transform_4(%arg0: i32) -> (i32, i32) {
    %c0_i32 = arith.constant 0 : i32
    %c0_i32_0 = arith.constant 0 : i32
    %c0_i32_1 = arith.constant 0 : i32
    return %c0_i32, %c0_i32_0 : i32, i32
  }
  func.func @transform_5(%arg0: i32) -> (i32, i32) {
    %c0_i32 = arith.constant 0 : i32
    %c0_i32_0 = arith.constant 0 : i32
    %c0_i32_1 = arith.constant 0 : i32
    return %c0_i32, %c0_i32_0 : i32, i32
  }
  func.func @transform_6(%arg0: i32) -> (i32, i32) {
    %c0_i32 = arith.constant 0 : i32
    %c0_i32_0 = arith.constant 0 : i32
    %c0_i32_1 = arith.constant 0 : i32
    return %c0_i32, %c0_i32_0 : i32, i32
  }
  func.func @transform_7(%arg0: i32) -> (i32, i32) {
    %c0_i32 = arith.constant 0 : i32
    %c0_i32_0 = arith.constant 0 : i32
    return %arg0, %c0_i32 : i32, i32
  }
}

</mosaic_0001>

<llo_original>
// kernel: model_a_forward.1
$region0: #{model_a_forward.1}
  #allocation0 [shape = 'u32[]', space=smem, size = 0x4, offset = 0x4, fixed_abs, tag = 'smem constant byte address 0x4 - core index']
  #allocation1 [shape = 'u32[144,128]{1,0:T(1,128)}', space=vmem, size = 0x12000, scoped, tag = 'internal scratch']
  %s0 = inlined_call_operand.hbm [shape: bf16[512,784], index: 0, kind: input, shape index: {}]
  %s1 = inlined_call_operand.hbm [shape: bf16[784,128], index: 1, kind: input, shape index: {}]
  %s2 = inlined_call_operand.hbm [shape: f32[1,128], index: 2, kind: input, shape index: {}]
  %s3 = inlined_call_operand.hbm [shape: f32[128,128], index: 3, kind: input, shape index: {}]
  %s4 = inlined_call_operand.hbm [shape: f32[1,128], index: 4, kind: input, shape index: {}]
  %s5 = inlined_call_operand.hbm [shape: f32[128,128], index: 5, kind: input, shape index: {}]
  %s6 = inlined_call_operand.hbm [shape: f32[1,128], index: 6, kind: input, shape index: {}]
  %s7 = inlined_call_operand.hbm [shape: f32[512,128], index: 7, kind: output, shape index: {}]
  %s8 = sld [smem:[#allocation0]]
  $region89: #{model_a_forward.1} parent=0
    _
  %s10 = ssub.s32 1, %s8
  %s11 = scalar_select 0, %s10, %s8
  $region1: #{model_a_forward.1} parent=0
    #allocation2 [shape = 'u8[917504]{0}', space=vmem, size = 0xe0000, scoped, tag = 'input window, operand 0']
    #allocation3 [shape = 's32[2]{0}', space=sflag, size = 0x8, scoped, tag = 'scoped memory for model_a_forward.1']
    #allocation4 [shape = 's32[2]{0}', space=sflag, size = 0x8, scoped, tag = 'scoped memory for model_a_forward.1']
    #allocation5 [shape = 'u8[200704]{0}', space=vmem, size = 0x31000, scoped, tag = 'input window, operand 1, single buffered']
    #allocation6 [shape = 's32[1]{0}', space=sflag, size = 0x4, scoped, tag = 'scoped memory for model_a_forward.1']
    #allocation7 [shape = 'u8[512]{0}', space=vmem, size = 0x400, scoped, tag = 'input window, operand 2, single buffered']
    #allocation8 [shape = 'u8[65536]{0}', space=vmem, size = 0x10000, scoped, tag = 'input window, operand 3, single buffered']
    #allocation9 [shape = 's32[1]{0}', space=sflag, size = 0x4, scoped, tag = 'scoped memory for model_a_forward.1']
    #allocation10 [shape = 'u8[512]{0}', space=vmem, size = 0x400, scoped, tag = 'input window, operand 4, single buffered']
    #allocation11 [shape = 'u8[65536]{0}', space=vmem, size = 0x10000, scoped, tag = 'input window, operand 5, single buffered']
    #allocation12 [shape = 's32[1]{0}', space=sflag, size = 0x4, scoped, tag = 'scoped memory for model_a_forward.1']
    #allocation13 [shape = 'u8[512]{0}', space=vmem, size = 0x400, scoped, tag = 'input window, operand 6, single buffered']
    #allocation14 [shape = 'u8[262144]{0}', space=vmem, size = 0x40000, scoped, tag = 'output window, operand 0']
    %12 = vsyncpa [#allocation3], 0
    %s13 = scalar_lea.sflag [#allocation3], 1
    %14 = vsyncpa %s13, 0
    %15 = vsyncpa [#allocation6], 0
    %16 = vsyncpa [#allocation9], 0
    %17 = vsyncpa [#allocation12], 0
    %18 = vsyncpa [#allocation4], 0
    %s19 = scalar_lea.sflag [#allocation4], 1
    %20 = vsyncpa %s19, 0
    loop: start=0, step=1, limit=4
    $region2: #{model_a_forward.1} parent=1 // loop_pre_header
      _
    $region3: #{model_a_forward.1} parent=1 // loop_header
      %s22 = sphi 0, %s26
      %p23 = scmp.ge.s32.totalorder %s22, 4
      %s32 = sphi 0, %s34
      %s35 = sphi 0, %s32
      %s36 = sphi 0, %s35
      %s52 = sphi 0, %s36
      %s56 = sphi 0, %s56
      %s58 = sphi 0, %s56
      %s59 = sphi 0, %s58
      %s73 = sphi 0, %s59
      %s77 = sphi 0, %s77
      %s79 = sphi 0, %s77
      %s80 = sphi 0, %s79
      %s94 = sphi 0, %s80
      %s98 = sphi 0, %s98
      %s100 = sphi 0, %s98
      %s101 = sphi 0, %s100
      %s115 = sphi 0, %s101
      %s119 = sphi 0, %s119
      %s121 = sphi 0, %s119
      %s122 = sphi 0, %s121
      %s136 = sphi 0, %s122
      %s140 = sphi 0, %s140
      %s142 = sphi 0, %s140
      %s143 = sphi 0, %s142
      %s157 = sphi 0, %s143
      %s161 = sphi 0, %s161
      %s163 = sphi 0, %s161
      %s164 = sphi 0, %s163
      %s178 = sphi 0, %s164
      %s184 = sphi 0, %s186
      %s187 = sphi 0, %s184
      %s188 = sphi 0, %s187
      %s204 = sphi 0, %s188
    $region4: #{model_a_forward.1} parent=1 // loop_header_branch
      %25 = sbr.rel (%p23) target = $region8
    $region5: #{model_a_forward.1} parent=1 // loop_body
      %s27 = ssub.s32 %s22, 1
      %s28 = ssub.s32 %s22, 2
      %s29 = sadd.s32 %s22, 1
      %s30 = ssub.s32 %s22, %s29
      %p31 = scmp.eq.s32.totalorder %s30, 0
      %s33 = sadd.s32 %s32, 1
      %s34 = scalar_select %p31, %s32, %s33
      %p37 = pneg %p31
      %p38 = scmp.eq.s32.totalorder %s22, 1
      %p39 = por %p37, %p38
      %p40 = scmp.ne.s32.totalorder %s32, %s35
      %p41 = scmp.eq.s32.totalorder %s22, 0
      %p42 = por %p40, %p41
      %p43 = scmp.ne.s32.totalorder %s32, %s35
      %p44 = scmp.eq.s32.totalorder %s27, 1
      %p45 = por %p43, %p44
      %p46 = scmp.ne.s32.totalorder %s35, %s36
      %p47 = scmp.eq.s32.totalorder %s27, 0
      %p48 = por %p46, %p47
      %p49 = scmp.ne.s32.totalorder %s35, %s36
      %p50 = scmp.eq.s32.totalorder %s28, 1
      %p51 = por %p49, %p50
      %p53 = scmp.ne.s32.totalorder %s36, %s52
      %p54 = scmp.eq.s32.totalorder %s28, 0
      %p55 = por %p53, %p54
      %s57 = sadd.s32 %s56, 1
      %p60 = scmp.eq.s32.totalorder %s22, 1
      %p61 = scmp.ne.s32.totalorder %s56, %s58
      %p62 = scmp.eq.s32.totalorder %s22, 0
      %p63 = por %p61, %p62
      %p64 = scmp.ne.s32.totalorder %s56, %s58
      %p65 = scmp.eq.s32.totalorder %s27, 1
      %p66 = por %p64, %p65
      %p67 = scmp.ne.s32.totalorder %s58, %s59
      %p68 = scmp.eq.s32.totalorder %s27, 0
      %p69 = por %p67, %p68
      %p70 = scmp.ne.s32.totalorder %s58, %s59
      %p71 = scmp.eq.s32.totalorder %s28, 1
      %p72 = por %p70, %p71
      %p74 = scmp.ne.s32.totalorder %s59, %s73
      %p75 = scmp.eq.s32.totalorder %s28, 0
      %p76 = por %p74, %p75
      %s78 = sadd.s32 %s77, 1
      %p81 = scmp.eq.s32.totalorder %s22, 1
      %p82 = scmp.ne.s32.totalorder %s77, %s79
      %p83 = scmp.eq.s32.totalorder %s22, 0
      %p84 = por %p82, %p83
      %p85 = scmp.ne.s32.totalorder %s77, %s79
      %p86 = scmp.eq.s32.totalorder %s27, 1
      %p87 = por %p85, %p86
      %p88 = scmp.ne.s32.totalorder %s79, %s80
      %p89 = scmp.eq.s32.totalorder %s27, 0
      %p90 = por %p88, %p89
      %p91 = scmp.ne.s32.totalorder %s79, %s80
      %p92 = scmp.eq.s32.totalorder %s28, 1
      %p93 = por %p91, %p92
      %p95 = scmp.ne.s32.totalorder %s80, %s94
      %p96 = scmp.eq.s32.totalorder %s28, 0
      %p97 = por %p95, %p96
      %s99 = sadd.s32 %s98, 1
      %p102 = scmp.eq.s32.totalorder %s22, 1
      %p103 = scmp.ne.s32.totalorder %s98, %s100
      %p104 = scmp.eq.s32.totalorder %s22, 0
      %p105 = por %p103, %p104
      %p106 = scmp.ne.s32.totalorder %s98, %s100
      %p107 = scmp.eq.s32.totalorder %s27, 1
      %p108 = por %p106, %p107
      %p109 = scmp.ne.s32.totalorder %s100, %s101
      %p110 = scmp.eq.s32.totalorder %s27, 0
      %p111 = por %p109, %p110
      %p112 = scmp.ne.s32.totalorder %s100, %s101
      %p113 = scmp.eq.s32.totalorder %s28, 1
      %p114 = por %p112, %p113
      %p116 = scmp.ne.s32.totalorder %s101, %s115
      %p117 = scmp.eq.s32.totalorder %s28, 0
      %p118 = por %p116, %p117
      %s120 = sadd.s32 %s119, 1
      %p123 = scmp.eq.s32.totalorder %s22, 1
      %p124 = scmp.ne.s32.totalorder %s119, %s121
      %p125 = scmp.eq.s32.totalorder %s22, 0
      %p126 = por %p124, %p125
      %p127 = scmp.ne.s32.totalorder %s119, %s121
      %p128 = scmp.eq.s32.totalorder %s27, 1
      %p129 = por %p127, %p128
      %p130 = scmp.ne.s32.totalorder %s121, %s122
      %p131 = scmp.eq.s32.totalorder %s27, 0
      %p132 = por %p130, %p131
      %p133 = scmp.ne.s32.totalorder %s121, %s122
      %p134 = scmp.eq.s32.totalorder %s28, 1
      %p135 = por %p133, %p134
      %p137 = scmp.ne.s32.totalorder %s122, %s136
      %p138 = scmp.eq.s32.totalorder %s28, 0
      %p139 = por %p137, %p138
      %s141 = sadd.s32 %s140, 1
      %p144 = scmp.eq.s32.totalorder %s22, 1
      %p145 = scmp.ne.s32.totalorder %s140, %s142
      %p146 = scmp.eq.s32.totalorder %s22, 0
      %p147 = por %p145, %p146
      %p148 = scmp.ne.s32.totalorder %s140, %s142
      %p149 = scmp.eq.s32.totalorder %s27, 1
      %p150 = por %p148, %p149
      %p151 = scmp.ne.s32.totalorder %s142, %s143
      %p152 = scmp.eq.s32.totalorder %s27, 0
      %p153 = por %p151, %p152
      %p154 = scmp.ne.s32.totalorder %s142, %s143
      %p155 = scmp.eq.s32.totalorder %s28, 1
      %p156 = por %p154, %p155
      %p158 = scmp.ne.s32.totalorder %s143, %s157
      %p159 = scmp.eq.s32.totalorder %s28, 0
      %p160 = por %p158, %p159
      %s162 = sadd.s32 %s161, 1
      %p165 = scmp.eq.s32.totalorder %s22, 1
      %p166 = scmp.ne.s32.totalorder %s161, %s163
      %p167 = scmp.eq.s32.totalorder %s22, 0
      %p168 = por %p166, %p167
      %p169 = scmp.ne.s32.totalorder %s161, %s163
      %p170 = scmp.eq.s32.totalorder %s27, 1
      %p171 = por %p169, %p170
      %p172 = scmp.ne.s32.totalorder %s163, %s164
      %p173 = scmp.eq.s32.totalorder %s27, 0
      %p174 = por %p172, %p173
      %p175 = scmp.ne.s32.totalorder %s163, %s164
      %p176 = scmp.eq.s32.totalorder %s28, 1
      %p177 = por %p175, %p176
      %p179 = scmp.ne.s32.totalorder %s164, %s178
      %p180 = scmp.eq.s32.totalorder %s28, 0
      %p181 = por %p179, %p180
      %s182 = ssub.s32 %s22, %s29
      %p183 = scmp.eq.s32.totalorder %s182, 0
      %s185 = sadd.s32 %s184, 1
      %s186 = scalar_select %p183, %s184, %s185
      %p189 = pneg %p183
      %p190 = scmp.eq.s32.totalorder %s22, 1
      %p191 = por %p189, %p190
      %p192 = scmp.ne.s32.totalorder %s184, %s187
      %p193 = scmp.eq.s32.totalorder %s22, 0
      %p194 = por %p192, %p193
      %p195 = scmp.ne.s32.totalorder %s184, %s187
      %p196 = scmp.eq.s32.totalorder %s27, 1
      %p197 = por %p195, %p196
      %p198 = scmp.ne.s32.totalorder %s187, %s188
      %p199 = scmp.eq.s32.totalorder %s27, 0
      %p200 = por %p198, %p199
      %p201 = scmp.ne.s32.totalorder %s187, %s188
      %p202 = scmp.eq.s32.totalorder %s28, 1
      %p203 = por %p201, %p202
      %p205 = scmp.ne.s32.totalorder %s188, %s204
      %p206 = scmp.eq.s32.totalorder %s28, 0
      %p207 = por %p205, %p206
      %p208 = scmp.le.s32.totalorder 1, %s22
      %p209 = scmp.lt.s32.totalorder %s22, 3
      %p210 = pnand %p208, %p209
      %p211 = pneg %p210
      // Predicated region
      $region9: #{model_a_forward.1} parent=5 // pred_check
        _
      $region10: #{model_a_forward.1} parent=5 // pred_check_branch
        %213 = sbr.rel (%p210) target = $region12
      $region11: #{model_a_forward.1} parent=5 // pred_region
        %s214 = ssub.s32 %s22, 1
        // Predicated region
        $region13: #{model_a_forward.1} parent=11 // pred_check
          %p215 = pneg %p69
        $region14: #{model_a_forward.1} parent=11 // pred_check_branch
          %217 = sbr.rel (%p215) target = $region16
        $region15: #{model_a_forward.1} parent=11 // pred_region
          %s219 = ssub.s32 6272, 6272
          %220 = vsyncadd [#allocation6], %s219
          %s221 = sshll.u32 [#allocation5], 4
          %s222 = int_to_ptr.vmem [resolvable:$true] %s221
          %227 = dma.hbm_to_vmem [thread:$0]  %s1, 6272, %s222, [#allocation6], 64, 64, 4
        $region16: #{model_a_forward.1} parent=11 // pred_fallthru
          _
        // Predicated region
        $region17: #{model_a_forward.1} parent=11 // pred_check
          %p228 = pneg %p90
        $region18: #{model_a_forward.1} parent=11 // pred_check_branch
          %230 = sbr.rel (%p228) target = $region20
        $region19: #{model_a_forward.1} parent=11 // pred_region
          %s232 = ssub.s32 16, 16
          %233 = vsyncadd [#allocation6], %s232
          %s235 = sshll.u32 [#allocation7], 4
          %s236 = int_to_ptr.vmem [resolvable:$true] %s235
          %238 = dma.hbm_to_vmem [thread:$0]  %s2, 16, %s236, [#allocation6]
        $region20: #{model_a_forward.1} parent=11 // pred_fallthru
          _
        // Predicated region
        $region21: #{model_a_forward.1} parent=11 // pred_check
          %p239 = pneg %p111
        $region22: #{model_a_forward.1} parent=11 // pred_check_branch
          %241 = sbr.rel (%p239) target = $region24
        $region23: #{model_a_forward.1} parent=11 // pred_region
          %s243 = ssub.s32 2048, 2048
          %244 = vsyncadd [#allocation9], %s243
          %s245 = sshll.u32 [#allocation8], 4
          %s246 = int_to_ptr.vmem [resolvable:$true] %s245
          %251 = dma.hbm_to_vmem [thread:$0]  %s3, 2048, %s246, [#allocation9], 128, 128, 8
        $region24: #{model_a_forward.1} parent=11 // pred_fallthru
          _
        // Predicated region
        $region25: #{model_a_forward.1} parent=11 // pred_check
          %p252 = pneg %p132
        $region26: #{model_a_forward.1} parent=11 // pred_check_branch
          %254 = sbr.rel (%p252) target = $region28
        $region27: #{model_a_forward.1} parent=11 // pred_region
          %s256 = ssub.s32 16, 16
          %257 = vsyncadd [#allocation9], %s256
          %s259 = sshll.u32 [#allocation10], 4
          %s260 = int_to_ptr.vmem [resolvable:$true] %s259
          %262 = dma.hbm_to_vmem [thread:$0]  %s4, 16, %s260, [#allocation9]
        $region28: #{model_a_forward.1} parent=11 // pred_fallthru
          _
        // Predicated region
        $region29: #{model_a_forward.1} parent=11 // pred_check
          %p263 = pneg %p153
        $region30: #{model_a_forward.1} parent=11 // pred_check_branch
          %265 = sbr.rel (%p263) target = $region32
        $region31: #{model_a_forward.1} parent=11 // pred_region
          %s267 = ssub.s32 2048, 2048
          %268 = vsyncadd [#allocation12], %s267
          %s269 = sshll.u32 [#allocation11], 4
          %s270 = int_to_ptr.vmem [resolvable:$true] %s269
          %275 = dma.hbm_to_vmem [thread:$0]  %s5, 2048, %s270, [#allocation12], 128, 128, 8
        $region32: #{model_a_forward.1} parent=11 // pred_fallthru
          _
        // Predicated region
        $region33: #{model_a_forward.1} parent=11 // pred_check
          %p276 = pneg %p174
        $region34: #{model_a_forward.1} parent=11 // pred_check_branch
          %278 = sbr.rel (%p276) target = $region36
        $region35: #{model_a_forward.1} parent=11 // pred_region
          %s280 = ssub.s32 16, 16
          %281 = vsyncadd [#allocation12], %s280
          %s283 = sshll.u32 [#allocation13], 4
          %s284 = int_to_ptr.vmem [resolvable:$true] %s283
          %286 = dma.hbm_to_vmem [thread:$0]  %s6, 16, %s284, [#allocation12]
        $region36: #{model_a_forward.1} parent=11 // pred_fallthru
          _
      $region12: #{model_a_forward.1} parent=5 // pred_fallthru
        _
      %p287 = scmp.lt.s32.totalorder %s22, 2
      // Predicated region
      $region37: #{model_a_forward.1} parent=5 // pred_check
        %p288 = pneg %p287
      $region38: #{model_a_forward.1} parent=5 // pred_check_branch
        %290 = sbr.rel (%p288) target = $region40
      $region39: #{model_a_forward.1} parent=5 // pred_region
        // Predicated region
        $region41: #{model_a_forward.1} parent=39 // pred_check
          %p291 = pneg %p42
        $region42: #{model_a_forward.1} parent=39 // pred_check_branch
          %293 = sbr.rel (%p291) target = $region44
        $region43: #{model_a_forward.1} parent=39 // pred_region
          %s294 = sand.u32 %s32, 1
          %s295 = scalar_lea.sflag [#allocation3], %s294
          %s296 = sand.u32 %s32, 1
          %s297 = smul.addr %s296, 896
          %s298 = scalar_lea.vmem [#allocation2], %s297
          %s299 = smul.u32 32, %s22
          %s301 = ssub.s32 14336, 14336
          %302 = vsyncadd %s295, %s301
          %s303 = smul.addr %s299, 7
          %s304 = smul.addr %s303, 64
          %s305 = scalar_lea.hbm %s0, %s304
          %s306 = sshll.u32 %s298, 4
          %s307 = int_to_ptr.vmem [resolvable:$true] %s306
          %312 = dma.hbm_to_vmem [thread:$0]  %s305, 14336, %s307, %s295, 448, 448, 28
        $region44: #{model_a_forward.1} parent=39 // pred_fallthru
          _
      $region40: #{model_a_forward.1} parent=5 // pred_fallthru
        _
      %p313 = scmp.le.s32.totalorder 1, %s22
      %p314 = scmp.lt.s32.totalorder %s22, 3
      %p315 = pnand %p313, %p314
      %p316 = pneg %p315
      // Predicated region
      $region45: #{model_a_forward.1} parent=5 // pred_check
        _
      $region46: #{model_a_forward.1} parent=5 // pred_check_branch
        %318 = sbr.rel (%p315) target = $region48
      $region47: #{model_a_forward.1} parent=5 // pred_region
        %s319 = ssub.s32 %s22, 1
        %s320 = sand.u32 %s35, 1
        %s321 = scalar_lea.sflag [#allocation3], %s320
        %s322 = sand.u32 %s35, 1
        %s323 = smul.addr %s322, 896
        %s324 = scalar_lea.vmem [#allocation2], %s323
        // Predicated region
        $region49: #{model_a_forward.1} parent=47 // pred_check
          %p325 = pneg %p48
        $region50: #{model_a_forward.1} parent=47 // pred_check_branch
          %327 = sbr.rel (%p325) target = $region52
        $region51: #{model_a_forward.1} parent=47 // pred_region
          %328 = dma.done %s321, 14336
        $region52: #{model_a_forward.1} parent=47 // pred_fallthru
          _
        // Predicated region
        $region53: #{model_a_forward.1} parent=47 // pred_check
          %p329 = pneg %p69
        $region54: #{model_a_forward.1} parent=47 // pred_check_branch
          %331 = sbr.rel (%p329) target = $region56
        $region55: #{model_a_forward.1} parent=47 // pred_region
          %332 = dma.done [#allocation6], 6272
        $region56: #{model_a_forward.1} parent=47 // pred_fallthru
          _
        // Predicated region
        $region57: #{model_a_forward.1} parent=47 // pred_check
          %p333 = pneg %p90
        $region58: #{model_a_forward.1} parent=47 // pred_check_branch
          %335 = sbr.rel (%p333) target = $region60
        $region59: #{model_a_forward.1} parent=47 // pred_region
          %336 = dma.done [#allocation6], 16
        $region60: #{model_a_forward.1} parent=47 // pred_fallthru
          _
        // Predicated region
        $region61: #{model_a_forward.1} parent=47 // pred_check
          %p337 = pneg %p111
        $region62: #{model_a_forward.1} parent=47 // pred_check_branch
          %339 = sbr.rel (%p337) target = $region64
        $region63: #{model_a_forward.1} parent=47 // pred_region
          %340 = dma.done [#allocation9], 2048
        $region64: #{model_a_forward.1} parent=47 // pred_fallthru
          _
        // Predicated region
        $region65: #{model_a_forward.1} parent=47 // pred_check
          %p341 = pneg %p132
        $region66: #{model_a_forward.1} parent=47 // pred_check_branch
          %343 = sbr.rel (%p341) target = $region68
        $region67: #{model_a_forward.1} parent=47 // pred_region
          %344 = dma.done [#allocation9], 16
        $region68: #{model_a_forward.1} parent=47 // pred_fallthru
          _
        // Predicated region
        $region69: #{model_a_forward.1} parent=47 // pred_check
          %p345 = pneg %p153
        $region70: #{model_a_forward.1} parent=47 // pred_check_branch
          %347 = sbr.rel (%p345) target = $region72
        $region71: #{model_a_forward.1} parent=47 // pred_region
          %348 = dma.done [#allocation12], 2048
        $region72: #{model_a_forward.1} parent=47 // pred_fallthru
          _
        // Predicated region
        $region73: #{model_a_forward.1} parent=47 // pred_check
          %p349 = pneg %p174
        $region74: #{model_a_forward.1} parent=47 // pred_check_branch
          %351 = sbr.rel (%p349) target = $region76
        $region75: #{model_a_forward.1} parent=47 // pred_region
          %352 = dma.done [#allocation12], 16
        $region76: #{model_a_forward.1} parent=47 // pred_fallthru
          _
        %s353 = sand.u32 %s35, 1
        %s354 = scalar_lea.sflag [#allocation3], %s353
        %s355 = sand.u32 %s35, 1
        %s356 = smul.addr %s355, 896
        %s357 = scalar_lea.vmem [#allocation2], %s356
        %p358 = pneg %p48
        %p359 = pneg %p45
        %p360 = pneg %p69
        %p361 = pneg %p66
        %p362 = pneg %p90
        %p363 = pneg %p87
        %p364 = pneg %p111
        %p365 = pneg %p108
        %p366 = pneg %p132
        %p367 = pneg %p129
        %p368 = pneg %p153
        %p369 = pneg %p150
        %p370 = pneg %p174
        %p371 = pneg %p171
        %p372 = pneg %p200
        %p373 = pneg %p197
        %s374 = sand.u32 %s187, 1
        %s375 = scalar_lea.sflag [#allocation4], %s374
        %s376 = sand.u32 %s187, 1
        %s377 = smul.addr %s376, 256
        %s378 = scalar_lea.vmem [#allocation14], %s377
        %s379 = smul.u32 32, %s27
        %s380 = smul.u32 32, %s27
        %v382 = vld [vmem:[%s324] sm:$0xff]
        %v383 = vld [vmem:[%s324 + $0x8] sm:$0xff]
        %v384 = vld [vmem:[%s324 + $0x10] sm:$0xff]
        %v385 = vld [vmem:[%s324 + $0x18] sm:$0xf]
        %v386 = vld [vmem:[%s324 + $0x1c] sm:$0xff]
        %v387 = vld [vmem:[%s324 + $0x24] sm:$0xff]
        %v388 = vld [vmem:[%s324 + $0x2c] sm:$0xff]
        %v389 = vld [vmem:[%s324 + $0x34] sm:$0xf]
        %v390 = vld [vmem:[%s324 + $0x38] sm:$0xff]
        %v391 = vld [vmem:[%s324 + $0x40] sm:$0xff]
        %v392 = vld [vmem:[%s324 + $0x48] sm:$0xff]
        %v393 = vld [vmem:[%s324 + $0x50] sm:$0xf]
        %v394 = vld [vmem:[%s324 + $0x54] sm:$0xff]
        %v395 = vld [vmem:[%s324 + $0x5c] sm:$0xff]
        %v396 = vld [vmem:[%s324 + $0x64] sm:$0xff]
        %v397 = vld [vmem:[%s324 + $0x6c] sm:$0xf]
        %v398 = vld [vmem:[%s324 + $0x70] sm:$0xff]
        %v399 = vld [vmem:[%s324 + $0x78] sm:$0xff]
        %v400 = vld [vmem:[%s324 + $0x80] sm:$0xff]
        %v401 = vld [vmem:[%s324 + $0x88] sm:$0xf]
        %v402 = vld [vmem:[%s324 + $0x8c] sm:$0xff]
        %v403 = vld [vmem:[%s324 + $0x94] sm:$0xff]
        %v404 = vld [vmem:[%s324 + $0x9c] sm:$0xff]
        %v405 = vld [vmem:[%s324 + $0xa4] sm:$0xf]
        %v406 = vld [vmem:[%s324 + $0xa8] sm:$0xff]
        %v407 = vld [vmem:[%s324 + $0xb0] sm:$0xff]
        %v408 = vld [vmem:[%s324 + $0xb8] sm:$0xff]
        %v409 = vld [vmem:[%s324 + $0xc0] sm:$0xf]
        %v410 = vld [vmem:[%s324 + $0xc4] sm:$0xff]
        %v411 = vld [vmem:[%s324 + $0xcc] sm:$0xff]
        %v412 = vld [vmem:[%s324 + $0xd4] sm:$0xff]
        %v413 = vld [vmem:[%s324 + $0xdc] sm:$0xf]
        %v414 = vld [vmem:[%s324 + $0xe0] sm:$0xff]
        %v415 = vld [vmem:[%s324 + $0xe8] sm:$0xff]
        %v416 = vld [vmem:[%s324 + $0xf0] sm:$0xff]
        %v417 = vld [vmem:[%s324 + $0xf8] sm:$0xf]
        %v418 = vld [vmem:[%s324 + $0xfc] sm:$0xff]
        %v419 = vld [vmem:[%s324 + $0x104] sm:$0xff]
        %v420 = vld [vmem:[%s324 + $0x10c] sm:$0xff]
        %v421 = vld [vmem:[%s324 + $0x114] sm:$0xf]
        %v422 = vld [vmem:[%s324 + $0x118] sm:$0xff]
        %v423 = vld [vmem:[%s324 + $0x120] sm:$0xff]
        %v424 = vld [vmem:[%s324 + $0x128] sm:$0xff]
        %v425 = vld [vmem:[%s324 + $0x130] sm:$0xf]
        %v426 = vld [vmem:[%s324 + $0x134] sm:$0xff]
        %v427 = vld [vmem:[%s324 + $0x13c] sm:$0xff]
        %v428 = vld [vmem:[%s324 + $0x144] sm:$0xff]
        %v429 = vld [vmem:[%s324 + $0x14c] sm:$0xf]
        %v430 = vld [vmem:[%s324 + $0x150] sm:$0xff]
        %v431 = vld [vmem:[%s324 + $0x158] sm:$0xff]
        %v432 = vld [vmem:[%s324 + $0x160] sm:$0xff]
        %v433 = vld [vmem:[%s324 + $0x168] sm:$0xf]
        %v434 = vld [vmem:[%s324 + $0x16c] sm:$0xff]
        %v435 = vld [vmem:[%s324 + $0x174] sm:$0xff]
        %v436 = vld [vmem:[%s324 + $0x17c] sm:$0xff]
        %v437 = vld [vmem:[%s324 + $0x184] sm:$0xf]
        %v438 = vld [vmem:[%s324 + $0x188] sm:$0xff]
        %v439 = vld [vmem:[%s324 + $0x190] sm:$0xff]
        %v440 = vld [vmem:[%s324 + $0x198] sm:$0xff]
        %v441 = vld [vmem:[%s324 + $0x1a0] sm:$0xf]
        %v442 = vld [vmem:[%s324 + $0x1a4] sm:$0xff]
        %v443 = vld [vmem:[%s324 + $0x1ac] sm:$0xff]
        %v444 = vld [vmem:[%s324 + $0x1b4] sm:$0xff]
        %v445 = vld [vmem:[%s324 + $0x1bc] sm:$0xf]
        %v446 = vld [vmem:[%s324 + $0x1c0] sm:$0xff]
        %v447 = vld [vmem:[%s324 + $0x1c8] sm:$0xff]
        %v448 = vld [vmem:[%s324 + $0x1d0] sm:$0xff]
        %v449 = vld [vmem:[%s324 + $0x1d8] sm:$0xf]
        %v450 = vld [vmem:[%s324 + $0x1dc] sm:$0xff]
        %v451 = vld [vmem:[%s324 + $0x1e4] sm:$0xff]
        %v452 = vld [vmem:[%s324 + $0x1ec] sm:$0xff]
        %v453 = vld [vmem:[%s324 + $0x1f4] sm:$0xf]
        %v454 = vld [vmem:[%s324 + $0x1f8] sm:$0xff]
        %v455 = vld [vmem:[%s324 + $0x200] sm:$0xff]
        %v456 = vld [vmem:[%s324 + $0x208] sm:$0xff]
        %v457 = vld [vmem:[%s324 + $0x210] sm:$0xf]
        %v458 = vld [vmem:[%s324 + $0x214] sm:$0xff]
        %v459 = vld [vmem:[%s324 + $0x21c] sm:$0xff]
        %v460 = vld [vmem:[%s324 + $0x224] sm:$0xff]
        %v461 = vld [vmem:[%s324 + $0x22c] sm:$0xf]
        %v462 = vld [vmem:[%s324 + $0x230] sm:$0xff]
        %v463 = vld [vmem:[%s324 + $0x238] sm:$0xff]
        %v464 = vld [vmem:[%s324 + $0x240] sm:$0xff]
        %v465 = vld [vmem:[%s324 + $0x248] sm:$0xf]
        %v466 = vld [vmem:[%s324 + $0x24c] sm:$0xff]
        %v467 = vld [vmem:[%s324 + $0x254] sm:$0xff]
        %v468 = vld [vmem:[%s324 + $0x25c] sm:$0xff]
        %v469 = vld [vmem:[%s324 + $0x264] sm:$0xf]
        %v470 = vld [vmem:[%s324 + $0x268] sm:$0xff]
        %v471 = vld [vmem:[%s324 + $0x270] sm:$0xff]
        %v472 = vld [vmem:[%s324 + $0x278] sm:$0xff]
        %v473 = vld [vmem:[%s324 + $0x280] sm:$0xf]
        %v474 = vld [vmem:[%s324 + $0x284] sm:$0xff]
        %v475 = vld [vmem:[%s324 + $0x28c] sm:$0xff]
        %v476 = vld [vmem:[%s324 + $0x294] sm:$0xff]
        %v477 = vld [vmem:[%s324 + $0x29c] sm:$0xf]
        %v478 = vld [vmem:[%s324 + $0x2a0] sm:$0xff]
        %v479 = vld [vmem:[%s324 + $0x2a8] sm:$0xff]
        %v480 = vld [vmem:[%s324 + $0x2b0] sm:$0xff]
        %v481 = vld [vmem:[%s324 + $0x2b8] sm:$0xf]
        %v482 = vld [vmem:[%s324 + $0x2bc] sm:$0xff]
        %v483 = vld [vmem:[%s324 + $0x2c4] sm:$0xff]
        %v484 = vld [vmem:[%s324 + $0x2cc] sm:$0xff]
        %v485 = vld [vmem:[%s324 + $0x2d4] sm:$0xf]
        %v486 = vld [vmem:[%s324 + $0x2d8] sm:$0xff]
        %v487 = vld [vmem:[%s324 + $0x2e0] sm:$0xff]
        %v488 = vld [vmem:[%s324 + $0x2e8] sm:$0xff]
        %v489 = vld [vmem:[%s324 + $0x2f0] sm:$0xf]
        %v490 = vld [vmem:[%s324 + $0x2f4] sm:$0xff]
        %v491 = vld [vmem:[%s324 + $0x2fc] sm:$0xff]
        %v492 = vld [vmem:[%s324 + $0x304] sm:$0xff]
        %v493 = vld [vmem:[%s324 + $0x30c] sm:$0xf]
        %v494 = vld [vmem:[%s324 + $0x310] sm:$0xff]
        %v495 = vld [vmem:[%s324 + $0x318] sm:$0xff]
        %v496 = vld [vmem:[%s324 + $0x320] sm:$0xff]
        %v497 = vld [vmem:[%s324 + $0x328] sm:$0xf]
        %v498 = vld [vmem:[%s324 + $0x32c] sm:$0xff]
        %v499 = vld [vmem:[%s324 + $0x334] sm:$0xff]
        %v500 = vld [vmem:[%s324 + $0x33c] sm:$0xff]
        %v501 = vld [vmem:[%s324 + $0x344] sm:$0xf]
        %v502 = vld [vmem:[%s324 + $0x348] sm:$0xff]
        %v503 = vld [vmem:[%s324 + $0x350] sm:$0xff]
        %v504 = vld [vmem:[%s324 + $0x358] sm:$0xff]
        %v505 = vld [vmem:[%s324 + $0x360] sm:$0xf]
        %v506 = vld [vmem:[%s324 + $0x364] sm:$0xff]
        %v507 = vld [vmem:[%s324 + $0x36c] sm:$0xff]
        %v508 = vld [vmem:[%s324 + $0x374] sm:$0xff]
        %v509 = vld [vmem:[%s324 + $0x37c] sm:$0xf]
        %v510 = vld [vmem:[#allocation5] sm:$0xf]
        %v511 = vld [vmem:[#allocation5 + $0x4] sm:$0xf]
        %v512 = vld [vmem:[#allocation5 + $0x8] sm:$0xf]
        %v513 = vld [vmem:[#allocation5 + $0xc] sm:$0xf]
        %v514 = vld [vmem:[#allocation5 + $0x10] sm:$0xf]
        %v515 = vld [vmem:[#allocation5 + $0x14] sm:$0xf]
        %v516 = vld [vmem:[#allocation5 + $0x18] sm:$0xf]
        %v517 = vld [vmem:[#allocation5 + $0x1c] sm:$0xf]
        %v518 = vld [vmem:[#allocation5 + $0x20] sm:$0xf]
        %v519 = vld [vmem:[#allocation5 + $0x24] sm:$0xf]
        %v520 = vld [vmem:[#allocation5 + $0x28] sm:$0xf]
        %v521 = vld [vmem:[#allocation5 + $0x2c] sm:$0xf]
        %v522 = vld [vmem:[#allocation5 + $0x30] sm:$0xf]
        %v523 = vld [vmem:[#allocation5 + $0x34] sm:$0xf]
        %v524 = vld [vmem:[#allocation5 + $0x38] sm:$0xf]
        %v525 = vld [vmem:[#allocation5 + $0x3c] sm:$0xf]
        %v526 = vld [vmem:[#allocation5 + $0x40] sm:$0xf]
        %v527 = vld [vmem:[#allocation5 + $0x44] sm:$0xf]
        %v528 = vld [vmem:[#allocation5 + $0x48] sm:$0xf]
        %v529 = vld [vmem:[#allocation5 + $0x4c] sm:$0xf]
        %v530 = vld [vmem:[#allocation5 + $0x50] sm:$0xf]
        %v531 = vld [vmem:[#allocation5 + $0x54] sm:$0xf]
        %v532 = vld [vmem:[#allocation5 + $0x58] sm:$0xf]
        %v533 = vld [vmem:[#allocation5 + $0x5c] sm:$0xf]
        %v534 = vld [vmem:[#allocation5 + $0x60] sm:$0xf]
        %v535 = vld [vmem:[#allocation5 + $0x64] sm:$0xf]
        %v536 = vld [vmem:[#allocation5 + $0x68] sm:$0xf]
        %v537 = vld [vmem:[#allocation5 + $0x6c] sm:$0xf]
        %v538 = vld [vmem:[#allocation5 + $0x70] sm:$0xf]
        %v539 = vld [vmem:[#allocation5 + $0x74] sm:$0xf]
        %v540 = vld [vmem:[#allocation5 + $0x78] sm:$0xf]
        %v541 = vld [vmem:[#allocation5 + $0x7c] sm:$0xf]
        %v542 = vld [vmem:[#allocation5 + $0x80] sm:$0xf]
        %v543 = vld [vmem:[#allocation5 + $0x84] sm:$0xf]
        %v544 = vld [vmem:[#allocation5 + $0x88] sm:$0xf]
        %v545 = vld [vmem:[#allocation5 + $0x8c] sm:$0xf]
        %v546 = vld [vmem:[#allocation5 + $0x90] sm:$0xf]
        %v547 = vld [vmem:[#allocation5 + $0x94] sm:$0xf]
        %v548 = vld [vmem:[#allocation5 + $0x98] sm:$0xf]
        %v549 = vld [vmem:[#allocation5 + $0x9c] sm:$0xf]
        %v550 = vld [vmem:[#allocation5 + $0xa0] sm:$0xf]
        %v551 = vld [vmem:[#allocation5 + $0xa4] sm:$0xf]
        %v552 = vld [vmem:[#allocation5 + $0xa8] sm:$0xf]
        %v553 = vld [vmem:[#allocation5 + $0xac] sm:$0xf]
        %v554 = vld [vmem:[#allocation5 + $0xb0] sm:$0xf]
        %v555 = vld [vmem:[#allocation5 + $0xb4] sm:$0xf]
        %v556 = vld [vmem:[#allocation5 + $0xb8] sm:$0xf]
        %v557 = vld [vmem:[#allocation5 + $0xbc] sm:$0xf]
        %v558 = vld [vmem:[#allocation5 + $0xc0] sm:$0xf]
        %v559 = vld [vmem:[#allocation5 + $0xc4] sm:$0xf]
        %v560 = vld [vmem:[#allocation5 + $0xc8] sm:$0xf]
        %v561 = vld [vmem:[#allocation5 + $0xcc] sm:$0xf]
        %v562 = vld [vmem:[#allocation5 + $0xd0] sm:$0xf]
        %v563 = vld [vmem:[#allocation5 + $0xd4] sm:$0xf]
        %v564 = vld [vmem:[#allocation5 + $0xd8] sm:$0xf]
        %v565 = vld [vmem:[#allocation5 + $0xdc] sm:$0xf]
        %v566 = vld [vmem:[#allocation5 + $0xe0] sm:$0xf]
        %v567 = vld [vmem:[#allocation5 + $0xe4] sm:$0xf]
        %v568 = vld [vmem:[#allocation5 + $0xe8] sm:$0xf]
        %v569 = vld [vmem:[#allocation5 + $0xec] sm:$0xf]
        %v570 = vld [vmem:[#allocation5 + $0xf0] sm:$0xf]
        %v571 = vld [vmem:[#allocation5 + $0xf4] sm:$0xf]
        %v572 = vld [vmem:[#allocation5 + $0xf8] sm:$0xf]
        %v573 = vld [vmem:[#allocation5 + $0xfc] sm:$0xf]
        %v574 = vld [vmem:[#allocation5 + $0x100] sm:$0xf]
        %v575 = vld [vmem:[#allocation5 + $0x104] sm:$0xf]
        %v576 = vld [vmem:[#allocation5 + $0x108] sm:$0xf]
        %v577 = vld [vmem:[#allocation5 + $0x10c] sm:$0xf]
        %v578 = vld [vmem:[#allocation5 + $0x110] sm:$0xf]
        %v579 = vld [vmem:[#allocation5 + $0x114] sm:$0xf]
        %v580 = vld [vmem:[#allocation5 + $0x118] sm:$0xf]
        %v581 = vld [vmem:[#allocation5 + $0x11c] sm:$0xf]
        %v582 = vld [vmem:[#allocation5 + $0x120] sm:$0xf]
        %v583 = vld [vmem:[#allocation5 + $0x124] sm:$0xf]
        %v584 = vld [vmem:[#allocation5 + $0x128] sm:$0xf]
        %v585 = vld [vmem:[#allocation5 + $0x12c] sm:$0xf]
        %v586 = vld [vmem:[#allocation5 + $0x130] sm:$0xf]
        %v587 = vld [vmem:[#allocation5 + $0x134] sm:$0xf]
        %v588 = vld [vmem:[#allocation5 + $0x138] sm:$0xf]
        %v589 = vld [vmem:[#allocation5 + $0x13c] sm:$0xf]
        %v590 = vld [vmem:[#allocation5 + $0x140] sm:$0xf]
        %v591 = vld [vmem:[#allocation5 + $0x144] sm:$0xf]
        %v592 = vld [vmem:[#allocation5 + $0x148] sm:$0xf]
        %v593 = vld [vmem:[#allocation5 + $0x14c] sm:$0xf]
        %v594 = vld [vmem:[#allocation5 + $0x150] sm:$0xf]
        %v595 = vld [vmem:[#allocation5 + $0x154] sm:$0xf]
        %v596 = vld [vmem:[#allocation5 + $0x158] sm:$0xf]
        %v597 = vld [vmem:[#allocation5 + $0x15c] sm:$0xf]
        %v598 = vld [vmem:[#allocation5 + $0x160] sm:$0xf]
        %v599 = vld [vmem:[#allocation5 + $0x164] sm:$0xf]
        %v600 = vld [vmem:[#allocation5 + $0x168] sm:$0xf]
        %v601 = vld [vmem:[#allocation5 + $0x16c] sm:$0xf]
        %v602 = vld [vmem:[#allocation5 + $0x170] sm:$0xf]
        %v603 = vld [vmem:[#allocation5 + $0x174] sm:$0xf]
        %v604 = vld [vmem:[#allocation5 + $0x178] sm:$0xf]
        %v605 = vld [vmem:[#allocation5 + $0x17c] sm:$0xf]
        %v606 = vld [vmem:[#allocation5 + $0x180] sm:$0xf]
        %v607 = vld [vmem:[#allocation5 + $0x184] sm:$0xf]
        %v608 = vld [vmem:[#allocation7] sm:$0x1]
        %v610 = vlaneseq
        %v611 = vshrl.u32 %v610, 7
        %v612 = vsub.s32 0, %v611
        %v613 = vrot.slane %v608, %v612
        %v743 = vunpack.c.l.b16 %v382
        %v744 = vunpack.c.h.b16 %v382
        %v745 = vunpack.c.l.b16 %v383
        %v746 = vunpack.c.h.b16 %v383
        %v747 = vunpack.c.l.b16 %v384
        %v748 = vunpack.c.h.b16 %v384
        %v749 = vunpack.c.l.b16 %v385
        %v750 = vunpack.c.l.b16 %v386
        %v751 = vunpack.c.h.b16 %v386
        %v752 = vunpack.c.l.b16 %v387
        %v753 = vunpack.c.h.b16 %v387
        %v754 = vunpack.c.l.b16 %v388
        %v755 = vunpack.c.h.b16 %v388
        %v756 = vunpack.c.l.b16 %v389
        %v757 = vunpack.c.l.b16 %v390
        %v758 = vunpack.c.h.b16 %v390
        %v759 = vunpack.c.l.b16 %v391
        %v760 = vunpack.c.h.b16 %v391
        %v761 = vunpack.c.l.b16 %v392
        %v762 = vunpack.c.h.b16 %v392
        %v763 = vunpack.c.l.b16 %v393
        %v764 = vunpack.c.l.b16 %v394
        %v765 = vunpack.c.h.b16 %v394
        %v766 = vunpack.c.l.b16 %v395
        %v767 = vunpack.c.h.b16 %v395
        %v768 = vunpack.c.l.b16 %v396
        %v769 = vunpack.c.h.b16 %v396
        %v770 = vunpack.c.l.b16 %v397
        %v771 = vunpack.c.l.b16 %v398
        %v772 = vunpack.c.h.b16 %v398
        %v773 = vunpack.c.l.b16 %v399
        %v774 = vunpack.c.h.b16 %v399
        %v775 = vunpack.c.l.b16 %v400
        %v776 = vunpack.c.h.b16 %v400
        %v777 = vunpack.c.l.b16 %v401
        %v778 = vunpack.c.l.b16 %v402
        %v779 = vunpack.c.h.b16 %v402
        %v780 = vunpack.c.l.b16 %v403
        %v781 = vunpack.c.h.b16 %v403
        %v782 = vunpack.c.l.b16 %v404
        %v783 = vunpack.c.h.b16 %v404
        %v784 = vunpack.c.l.b16 %v405
        %v785 = vunpack.c.l.b16 %v406
        %v786 = vunpack.c.h.b16 %v406
        %v787 = vunpack.c.l.b16 %v407
        %v788 = vunpack.c.h.b16 %v407
        %v789 = vunpack.c.l.b16 %v408
        %v790 = vunpack.c.h.b16 %v408
        %v791 = vunpack.c.l.b16 %v409
        %v792 = vunpack.c.l.b16 %v410
        %v793 = vunpack.c.h.b16 %v410
        %v794 = vunpack.c.l.b16 %v411
        %v795 = vunpack.c.h.b16 %v411
        %v796 = vunpack.c.l.b16 %v412
        %v797 = vunpack.c.h.b16 %v412
        %v798 = vunpack.c.l.b16 %v413
        %v799 = vunpack.c.l.b16 %v414
        %v800 = vunpack.c.h.b16 %v414
        %v801 = vunpack.c.l.b16 %v415
        %v802 = vunpack.c.h.b16 %v415
        %v803 = vunpack.c.l.b16 %v416
        %v804 = vunpack.c.h.b16 %v416
        %v805 = vunpack.c.l.b16 %v417
        %v806 = vunpack.c.l.b16 %v418
        %v807 = vunpack.c.h.b16 %v418
        %v808 = vunpack.c.l.b16 %v419
        %v809 = vunpack.c.h.b16 %v419
        %v810 = vunpack.c.l.b16 %v420
        %v811 = vunpack.c.h.b16 %v420
        %v812 = vunpack.c.l.b16 %v421
        %v813 = vunpack.c.l.b16 %v422
        %v814 = vunpack.c.h.b16 %v422
        %v815 = vunpack.c.l.b16 %v423
        %v816 = vunpack.c.h.b16 %v423
        %v817 = vunpack.c.l.b16 %v424
        %v818 = vunpack.c.h.b16 %v424
        %v819 = vunpack.c.l.b16 %v425
        %v820 = vunpack.c.l.b16 %v426
        %v821 = vunpack.c.h.b16 %v426
        %v822 = vunpack.c.l.b16 %v427
        %v823 = vunpack.c.h.b16 %v427
        %v824 = vunpack.c.l.b16 %v428
        %v825 = vunpack.c.h.b16 %v428
        %v826 = vunpack.c.l.b16 %v429
        %v827 = vunpack.c.l.b16 %v430
        %v828 = vunpack.c.h.b16 %v430
        %v829 = vunpack.c.l.b16 %v431
        %v830 = vunpack.c.h.b16 %v431
        %v831 = vunpack.c.l.b16 %v432
        %v832 = vunpack.c.h.b16 %v432
        %v833 = vunpack.c.l.b16 %v433
        %v834 = vunpack.c.l.b16 %v434
        %v835 = vunpack.c.h.b16 %v434
        %v836 = vunpack.c.l.b16 %v435
        %v837 = vunpack.c.h.b16 %v435
        %v838 = vunpack.c.l.b16 %v436
        %v839 = vunpack.c.h.b16 %v436
        %v840 = vunpack.c.l.b16 %v437
        %v841 = vunpack.c.l.b16 %v438
        %v842 = vunpack.c.h.b16 %v438
        %v843 = vunpack.c.l.b16 %v439
        %v844 = vunpack.c.h.b16 %v439
        %v845 = vunpack.c.l.b16 %v440
        %v846 = vunpack.c.h.b16 %v440
        %v847 = vunpack.c.l.b16 %v441
        %v848 = vunpack.c.l.b16 %v442
        %v849 = vunpack.c.h.b16 %v442
        %v850 = vunpack.c.l.b16 %v443
        %v851 = vunpack.c.h.b16 %v443
        %v852 = vunpack.c.l.b16 %v444
        %v853 = vunpack.c.h.b16 %v444
        %v854 = vunpack.c.l.b16 %v445
        %v855 = vunpack.c.l.b16 %v446
        %v856 = vunpack.c.h.b16 %v446
        %v857 = vunpack.c.l.b16 %v447
        %v858 = vunpack.c.h.b16 %v447
        %v859 = vunpack.c.l.b16 %v448
        %v860 = vunpack.c.h.b16 %v448
        %v861 = vunpack.c.l.b16 %v449
        %v862 = vunpack.c.l.b16 %v450
        %v863 = vunpack.c.h.b16 %v450
        %v864 = vunpack.c.l.b16 %v451
        %v865 = vunpack.c.h.b16 %v451
        %v866 = vunpack.c.l.b16 %v452
        %v867 = vunpack.c.h.b16 %v452
        %v868 = vunpack.c.l.b16 %v453
        %v869 = vunpack.c.l.b16 %v454
        %v870 = vunpack.c.h.b16 %v454
        %v871 = vunpack.c.l.b16 %v455
        %v872 = vunpack.c.h.b16 %v455
        %v873 = vunpack.c.l.b16 %v456
        %v874 = vunpack.c.h.b16 %v456
        %v875 = vunpack.c.l.b16 %v457
        %v876 = vunpack.c.l.b16 %v458
        %v877 = vunpack.c.h.b16 %v458
        %v878 = vunpack.c.l.b16 %v459
        %v879 = vunpack.c.h.b16 %v459
        %v880 = vunpack.c.l.b16 %v460
        %v881 = vunpack.c.h.b16 %v460
        %v882 = vunpack.c.l.b16 %v461
        %v883 = vunpack.c.l.b16 %v462
        %v884 = vunpack.c.h.b16 %v462
        %v885 = vunpack.c.l.b16 %v463
        %v886 = vunpack.c.h.b16 %v463
        %v887 = vunpack.c.l.b16 %v464
        %v888 = vunpack.c.h.b16 %v464
        %v889 = vunpack.c.l.b16 %v465
        %v890 = vunpack.c.l.b16 %v466
        %v891 = vunpack.c.h.b16 %v466
        %v892 = vunpack.c.l.b16 %v467
        %v893 = vunpack.c.h.b16 %v467
        %v894 = vunpack.c.l.b16 %v468
        %v895 = vunpack.c.h.b16 %v468
        %v896 = vunpack.c.l.b16 %v469
        %v897 = vunpack.c.l.b16 %v470
        %v898 = vunpack.c.h.b16 %v470
        %v899 = vunpack.c.l.b16 %v471
        %v900 = vunpack.c.h.b16 %v471
        %v901 = vunpack.c.l.b16 %v472
        %v902 = vunpack.c.h.b16 %v472
        %v903 = vunpack.c.l.b16 %v473
        %v904 = vunpack.c.l.b16 %v474
        %v905 = vunpack.c.h.b16 %v474
        %v906 = vunpack.c.l.b16 %v475
        %v907 = vunpack.c.h.b16 %v475
        %v908 = vunpack.c.l.b16 %v476
        %v909 = vunpack.c.h.b16 %v476
        %v910 = vunpack.c.l.b16 %v477
        %v911 = vunpack.c.l.b16 %v478
        %v912 = vunpack.c.h.b16 %v478
        %v913 = vunpack.c.l.b16 %v479
        %v914 = vunpack.c.h.b16 %v479
        %v915 = vunpack.c.l.b16 %v480
        %v916 = vunpack.c.h.b16 %v480
        %v917 = vunpack.c.l.b16 %v481
        %v918 = vunpack.c.l.b16 %v482
        %v919 = vunpack.c.h.b16 %v482
        %v920 = vunpack.c.l.b16 %v483
        %v921 = vunpack.c.h.b16 %v483
        %v922 = vunpack.c.l.b16 %v484
        %v923 = vunpack.c.h.b16 %v484
        %v924 = vunpack.c.l.b16 %v485
        %v925 = vunpack.c.l.b16 %v486
        %v926 = vunpack.c.h.b16 %v486
        %v927 = vunpack.c.l.b16 %v487
        %v928 = vunpack.c.h.b16 %v487
        %v929 = vunpack.c.l.b16 %v488
        %v930 = vunpack.c.h.b16 %v488
        %v931 = vunpack.c.l.b16 %v489
        %v932 = vunpack.c.l.b16 %v490
        %v933 = vunpack.c.h.b16 %v490
        %v934 = vunpack.c.l.b16 %v491
        %v935 = vunpack.c.h.b16 %v491
        %v936 = vunpack.c.l.b16 %v492
        %v937 = vunpack.c.h.b16 %v492
        %v938 = vunpack.c.l.b16 %v493
        %v939 = vunpack.c.l.b16 %v494
        %v940 = vunpack.c.h.b16 %v494
        %v941 = vunpack.c.l.b16 %v495
        %v942 = vunpack.c.h.b16 %v495
        %v943 = vunpack.c.l.b16 %v496
        %v944 = vunpack.c.h.b16 %v496
        %v945 = vunpack.c.l.b16 %v497
        %v946 = vunpack.c.l.b16 %v498
        %v947 = vunpack.c.h.b16 %v498
        %v948 = vunpack.c.l.b16 %v499
        %v949 = vunpack.c.h.b16 %v499
        %v950 = vunpack.c.l.b16 %v500
        %v951 = vunpack.c.h.b16 %v500
        %v952 = vunpack.c.l.b16 %v501
        %v953 = vunpack.c.l.b16 %v502
        %v954 = vunpack.c.h.b16 %v502
        %v955 = vunpack.c.l.b16 %v503
        %v956 = vunpack.c.h.b16 %v503
        %v957 = vunpack.c.l.b16 %v504
        %v958 = vunpack.c.h.b16 %v504
        %v959 = vunpack.c.l.b16 %v505
        %v960 = vunpack.c.l.b16 %v506
        %v961 = vunpack.c.h.b16 %v506
        %v962 = vunpack.c.l.b16 %v507
        %v963 = vunpack.c.h.b16 %v507
        %v964 = vunpack.c.l.b16 %v508
        %v965 = vunpack.c.h.b16 %v508
        %v966 = vunpack.c.l.b16 %v509
        %v967 = vpack.c.b16 %v750, %v743
        %v968 = vpack.c.b16 %v751, %v744
        %v969 = vpack.c.b16 %v752, %v745
        %v970 = vpack.c.b16 %v753, %v746
        %v971 = vpack.c.b16 %v754, %v747
        %v972 = vpack.c.b16 %v755, %v748
        %v973 = vpack.c.b16 %v756, %v749
        %v974 = vpack.c.b16 %v764, %v757
        %v975 = vpack.c.b16 %v765, %v758
        %v976 = vpack.c.b16 %v766, %v759
        %v977 = vpack.c.b16 %v767, %v760
        %v978 = vpack.c.b16 %v768, %v761
        %v979 = vpack.c.b16 %v769, %v762
        %v980 = vpack.c.b16 %v770, %v763
        %v981 = vpack.c.b16 %v778, %v771
        %v982 = vpack.c.b16 %v779, %v772
        %v983 = vpack.c.b16 %v780, %v773
        %v984 = vpack.c.b16 %v781, %v774
        %v985 = vpack.c.b16 %v782, %v775
        %v986 = vpack.c.b16 %v783, %v776
        %v987 = vpack.c.b16 %v784, %v777
        %v988 = vpack.c.b16 %v792, %v785
        %v989 = vpack.c.b16 %v793, %v786
        %v990 = vpack.c.b16 %v794, %v787
        %v991 = vpack.c.b16 %v795, %v788
        %v992 = vpack.c.b16 %v796, %v789
        %v993 = vpack.c.b16 %v797, %v790
        %v994 = vpack.c.b16 %v798, %v791
        %v995 = vpack.c.b16 %v806, %v799
        %v996 = vpack.c.b16 %v807, %v800
        %v997 = vpack.c.b16 %v808, %v801
        %v998 = vpack.c.b16 %v809, %v802
        %v999 = vpack.c.b16 %v810, %v803
        %v1000 = vpack.c.b16 %v811, %v804
        %v1001 = vpack.c.b16 %v812, %v805
        %v1002 = vpack.c.b16 %v820, %v813
        %v1003 = vpack.c.b16 %v821, %v814
        %v1004 = vpack.c.b16 %v822, %v815
        %v1005 = vpack.c.b16 %v823, %v816
        %v1006 = vpack.c.b16 %v824, %v817
        %v1007 = vpack.c.b16 %v825, %v818
        %v1008 = vpack.c.b16 %v826, %v819
        %v1009 = vpack.c.b16 %v834, %v827
        %v1010 = vpack.c.b16 %v835, %v828
        %v1011 = vpack.c.b16 %v836, %v829
        %v1012 = vpack.c.b16 %v837, %v830
        %v1013 = vpack.c.b16 %v838, %v831
        %v1014 = vpack.c.b16 %v839, %v832
        %v1015 = vpack.c.b16 %v840, %v833
        %v1016 = vpack.c.b16 %v848, %v841
        %v1017 = vpack.c.b16 %v849, %v842
        %v1018 = vpack.c.b16 %v850, %v843
        %v1019 = vpack.c.b16 %v851, %v844
        %v1020 = vpack.c.b16 %v852, %v845
        %v1021 = vpack.c.b16 %v853, %v846
        %v1022 = vpack.c.b16 %v854, %v847
        %v1023 = vpack.c.b16 %v862, %v855
        %v1024 = vpack.c.b16 %v863, %v856
        %v1025 = vpack.c.b16 %v864, %v857
        %v1026 = vpack.c.b16 %v865, %v858
        %v1027 = vpack.c.b16 %v866, %v859
        %v1028 = vpack.c.b16 %v867, %v860
        %v1029 = vpack.c.b16 %v868, %v861
        %v1030 = vpack.c.b16 %v876, %v869
        %v1031 = vpack.c.b16 %v877, %v870
        %v1032 = vpack.c.b16 %v878, %v871
        %v1033 = vpack.c.b16 %v879, %v872
        %v1034 = vpack.c.b16 %v880, %v873
        %v1035 = vpack.c.b16 %v881, %v874
        %v1036 = vpack.c.b16 %v882, %v875
        %v1037 = vpack.c.b16 %v890, %v883
        %v1038 = vpack.c.b16 %v891, %v884
        %v1039 = vpack.c.b16 %v892, %v885
        %v1040 = vpack.c.b16 %v893, %v886
        %v1041 = vpack.c.b16 %v894, %v887
        %v1042 = vpack.c.b16 %v895, %v888
        %v1043 = vpack.c.b16 %v896, %v889
        %v1044 = vpack.c.b16 %v904, %v897
        %v1045 = vpack.c.b16 %v905, %v898
        %v1046 = vpack.c.b16 %v906, %v899
        %v1047 = vpack.c.b16 %v907, %v900
        %v1048 = vpack.c.b16 %v908, %v901
        %v1049 = vpack.c.b16 %v909, %v902
        %v1050 = vpack.c.b16 %v910, %v903
        %v1051 = vpack.c.b16 %v918, %v911
        %v1052 = vpack.c.b16 %v919, %v912
        %v1053 = vpack.c.b16 %v920, %v913
        %v1054 = vpack.c.b16 %v921, %v914
        %v1055 = vpack.c.b16 %v922, %v915
        %v1056 = vpack.c.b16 %v923, %v916
        %v1057 = vpack.c.b16 %v924, %v917
        %v1058 = vpack.c.b16 %v932, %v925
        %v1059 = vpack.c.b16 %v933, %v926
        %v1060 = vpack.c.b16 %v934, %v927
        %v1061 = vpack.c.b16 %v935, %v928
        %v1062 = vpack.c.b16 %v936, %v929
        %v1063 = vpack.c.b16 %v937, %v930
        %v1064 = vpack.c.b16 %v938, %v931
        %v1065 = vpack.c.b16 %v946, %v939
        %v1066 = vpack.c.b16 %v947, %v940
        %v1067 = vpack.c.b16 %v948, %v941
        %v1068 = vpack.c.b16 %v949, %v942
        %v1069 = vpack.c.b16 %v950, %v943
        %v1070 = vpack.c.b16 %v951, %v944
        %v1071 = vpack.c.b16 %v952, %v945
        %v1072 = vpack.c.b16 %v960, %v953
        %v1073 = vpack.c.b16 %v961, %v954
        %v1074 = vpack.c.b16 %v962, %v955
        %v1075 = vpack.c.b16 %v963, %v956
        %v1076 = vpack.c.b16 %v964, %v957
        %v1077 = vpack.c.b16 %v965, %v958
        %v1078 = vpack.c.b16 %v966, %v959
        %v1273 = vunpack.c.l.b16 %v510
        %v1274 = vunpack.c.l.b16 %v511
        %v1275 = vunpack.c.l.b16 %v512
        %v1276 = vunpack.c.l.b16 %v513
        %v1277 = vunpack.c.l.b16 %v514
        %v1278 = vunpack.c.l.b16 %v515
        %v1279 = vunpack.c.l.b16 %v516
        %v1280 = vunpack.c.l.b16 %v517
        %v1281 = vunpack.c.l.b16 %v518
        %v1282 = vunpack.c.l.b16 %v519
        %v1283 = vunpack.c.l.b16 %v520
        %v1284 = vunpack.c.l.b16 %v521
        %v1285 = vunpack.c.l.b16 %v522
        %v1286 = vunpack.c.l.b16 %v523
        %v1287 = vunpack.c.l.b16 %v524
        %v1288 = vunpack.c.l.b16 %v525
        %v1289 = vunpack.c.l.b16 %v526
        %v1290 = vunpack.c.l.b16 %v527
        %v1291 = vunpack.c.l.b16 %v528
        %v1292 = vunpack.c.l.b16 %v529
        %v1293 = vunpack.c.l.b16 %v530
        %v1294 = vunpack.c.l.b16 %v531
        %v1295 = vunpack.c.l.b16 %v532
        %v1296 = vunpack.c.l.b16 %v533
        %v1297 = vunpack.c.l.b16 %v534
        %v1298 = vunpack.c.l.b16 %v535
        %v1299 = vunpack.c.l.b16 %v536
        %v1300 = vunpack.c.l.b16 %v537
        %v1301 = vunpack.c.l.b16 %v538
        %v1302 = vunpack.c.l.b16 %v539
        %v1303 = vunpack.c.l.b16 %v540
        %v1304 = vunpack.c.l.b16 %v541
        %v1305 = vunpack.c.l.b16 %v542
        %v1306 = vunpack.c.l.b16 %v543
        %v1307 = vunpack.c.l.b16 %v544
        %v1308 = vunpack.c.l.b16 %v545
        %v1309 = vunpack.c.l.b16 %v546
        %v1310 = vunpack.c.l.b16 %v547
        %v1311 = vunpack.c.l.b16 %v548
        %v1312 = vunpack.c.l.b16 %v549
        %v1313 = vunpack.c.l.b16 %v550
        %v1314 = vunpack.c.l.b16 %v551
        %v1315 = vunpack.c.l.b16 %v552
        %v1316 = vunpack.c.l.b16 %v553
        %v1317 = vunpack.c.l.b16 %v554
        %v1318 = vunpack.c.l.b16 %v555
        %v1319 = vunpack.c.l.b16 %v556
        %v1320 = vunpack.c.l.b16 %v557
        %v1321 = vunpack.c.l.b16 %v558
        %v1322 = vunpack.c.l.b16 %v559
        %v1323 = vunpack.c.l.b16 %v560
        %v1324 = vunpack.c.l.b16 %v561
        %v1325 = vunpack.c.l.b16 %v562
        %v1326 = vunpack.c.l.b16 %v563
        %v1327 = vunpack.c.l.b16 %v564
        %v1328 = vunpack.c.l.b16 %v565
        %v1329 = vunpack.c.l.b16 %v566
        %v1330 = vunpack.c.l.b16 %v567
        %v1331 = vunpack.c.l.b16 %v568
        %v1332 = vunpack.c.l.b16 %v569
        %v1333 = vunpack.c.l.b16 %v570
        %v1334 = vunpack.c.l.b16 %v571
        %v1335 = vunpack.c.l.b16 %v572
        %v1336 = vunpack.c.l.b16 %v573
        %v1337 = vunpack.c.l.b16 %v574
        %v1338 = vunpack.c.l.b16 %v575
        %v1339 = vunpack.c.l.b16 %v576
        %v1340 = vunpack.c.l.b16 %v577
        %v1341 = vunpack.c.l.b16 %v578
        %v1342 = vunpack.c.l.b16 %v579
        %v1343 = vunpack.c.l.b16 %v580
        %v1344 = vunpack.c.l.b16 %v581
        %v1345 = vunpack.c.l.b16 %v582
        %v1346 = vunpack.c.l.b16 %v583
        %v1347 = vunpack.c.l.b16 %v584
        %v1348 = vunpack.c.l.b16 %v585
        %v1349 = vunpack.c.l.b16 %v586
        %v1350 = vunpack.c.l.b16 %v587
        %v1351 = vunpack.c.l.b16 %v588
        %v1352 = vunpack.c.l.b16 %v589
        %v1353 = vunpack.c.l.b16 %v590
        %v1354 = vunpack.c.l.b16 %v591
        %v1355 = vunpack.c.l.b16 %v592
        %v1356 = vunpack.c.l.b16 %v593
        %v1357 = vunpack.c.l.b16 %v594
        %v1358 = vunpack.c.l.b16 %v595
        %v1359 = vunpack.c.l.b16 %v596
        %v1360 = vunpack.c.l.b16 %v597
        %v1361 = vunpack.c.l.b16 %v598
        %v1362 = vunpack.c.l.b16 %v599
        %v1363 = vunpack.c.l.b16 %v600
        %v1364 = vunpack.c.l.b16 %v601
        %v1365 = vunpack.c.l.b16 %v602
        %v1366 = vunpack.c.l.b16 %v603
        %v1367 = vunpack.c.l.b16 %v604
        %v1368 = vunpack.c.l.b16 %v605
        %v1369 = vunpack.c.l.b16 %v606
        %v1370 = vunpack.c.l.b16 %v607
        %v1371 = vpack.c.b16 %v1274, %v1273
        %v1372 = vpack.c.b16 %v1276, %v1275
        %v1373 = vpack.c.b16 %v1278, %v1277
        %v1374 = vpack.c.b16 %v1280, %v1279
        %v1375 = vpack.c.b16 %v1282, %v1281
        %v1376 = vpack.c.b16 %v1284, %v1283
        %v1377 = vpack.c.b16 %v1286, %v1285
        %v1378 = vpack.c.b16 %v1288, %v1287
        %v1379 = vpack.c.b16 %v1290, %v1289
        %v1380 = vpack.c.b16 %v1292, %v1291
        %v1381 = vpack.c.b16 %v1294, %v1293
        %v1382 = vpack.c.b16 %v1296, %v1295
        %v1383 = vpack.c.b16 %v1298, %v1297
        %v1384 = vpack.c.b16 %v1300, %v1299
        %v1385 = vpack.c.b16 %v1302, %v1301
        %v1386 = vpack.c.b16 %v1304, %v1303
        %v1387 = vpack.c.b16 %v1306, %v1305
        %v1388 = vpack.c.b16 %v1308, %v1307
        %v1389 = vpack.c.b16 %v1310, %v1309
        %v1390 = vpack.c.b16 %v1312, %v1311
        %v1391 = vpack.c.b16 %v1314, %v1313
        %v1392 = vpack.c.b16 %v1316, %v1315
        %v1393 = vpack.c.b16 %v1318, %v1317
        %v1394 = vpack.c.b16 %v1320, %v1319
        %v1395 = vpack.c.b16 %v1322, %v1321
        %v1396 = vpack.c.b16 %v1324, %v1323
        %v1397 = vpack.c.b16 %v1326, %v1325
        %v1398 = vpack.c.b16 %v1328, %v1327
        %v1399 = vpack.c.b16 %v1330, %v1329
        %v1400 = vpack.c.b16 %v1332, %v1331
        %v1401 = vpack.c.b16 %v1334, %v1333
        %v1402 = vpack.c.b16 %v1336, %v1335
        %v1403 = vpack.c.b16 %v1338, %v1337
        %v1404 = vpack.c.b16 %v1340, %v1339
        %v1405 = vpack.c.b16 %v1342, %v1341
        %v1406 = vpack.c.b16 %v1344, %v1343
        %v1407 = vpack.c.b16 %v1346, %v1345
        %v1408 = vpack.c.b16 %v1348, %v1347
        %v1409 = vpack.c.b16 %v1350, %v1349
        %v1410 = vpack.c.b16 %v1352, %v1351
        %v1411 = vpack.c.b16 %v1354, %v1353
        %v1412 = vpack.c.b16 %v1356, %v1355
        %v1413 = vpack.c.b16 %v1358, %v1357
        %v1414 = vpack.c.b16 %v1360, %v1359
        %v1415 = vpack.c.b16 %v1362, %v1361
        %v1416 = vpack.c.b16 %v1364, %v1363
        %v1417 = vpack.c.b16 %v1366, %v1365
        %v1418 = vpack.c.b16 %v1368, %v1367
        %v1419 = vpack.c.b16 %v1370, %v1369
        %vm1469 = vcmask 130048
        %v1471 = vsel %vm1469, %v973, 0
        %v1474 = vsel %vm1469, %v980, 0
        %v1477 = vsel %vm1469, %v987, 0
        %v1480 = vsel %vm1469, %v994, 0
        %v1483 = vsel %vm1469, %v1001, 0
        %v1486 = vsel %vm1469, %v1008, 0
        %v1489 = vsel %vm1469, %v1015, 0
        %v1492 = vsel %vm1469, %v1022, 0
        %v1495 = vsel %vm1469, %v1029, 0
        %v1498 = vsel %vm1469, %v1036, 0
        %v1501 = vsel %vm1469, %v1043, 0
        %v1504 = vsel %vm1469, %v1050, 0
        %v1507 = vsel %vm1469, %v1057, 0
        %v1510 = vsel %vm1469, %v1064, 0
        %v1513 = vsel %vm1469, %v1071, 0
        %v1516 = vsel %vm1469, %v1078, 0
        %1518 = vmatprep.subr.bf16.mxu0 0
        %1519 = vmatpush1.bf16.msra.mxu0 %v1371
        %1520 = vmatprep.subr.bf16.mxu0 0
        %1521 = vmatpush1.bf16.msra.mxu0 %v1372
        %1522 = vmatprep.subr.bf16.mxu0 0
        %1523 = vmatpush1.bf16.msra.mxu0 %v1373
        %1524 = vmatprep.subr.bf16.mxu0 0
        %1525 = vmatpush1.bf16.msra.mxu0 %v1374
        %1526 = vmatprep.subr.bf16.mxu0 0
        %1527 = vmatpush1.bf16.msra.mxu0 %v1375
        %1528 = vmatprep.subr.bf16.mxu0 0
        %1529 = vmatpush1.bf16.msra.mxu0 %v1376
        %1530 = vmatprep.subr.bf16.mxu0 0
        %1531 = vmatpush1.bf16.msra.mxu0 %v1377
        %1532 = vmatprep.subr.bf16.mxu0 0
        %1533 = vmatpush1.bf16.msra.mxu0 %v1378
        %1534 = vmatprep.subr.bf16.mxu0 0
        %1535 = vmatpush1.bf16.msra.mxu0 %v1379
        %1536 = vmatprep.subr.bf16.mxu0 0
        %1537 = vmatpush1.bf16.msra.mxu0 %v1380
        %1538 = vmatprep.subr.bf16.mxu0 0
        %1539 = vmatpush1.bf16.msra.mxu0 %v1381
        %1540 = vmatprep.subr.bf16.mxu0 0
        %1541 = vmatpush1.bf16.msra.mxu0 %v1382
        %1542 = vmatprep.subr.bf16.mxu0 0
        %1543 = vmatpush1.bf16.msra.mxu0 %v1383
        %1544 = vmatprep.subr.bf16.mxu0 0
        %1545 = vmatpush1.bf16.msra.mxu0 %v1384
        %1546 = vmatprep.subr.bf16.mxu0 0
        %1547 = vmatpush1.bf16.msra.mxu0 %v1385
        %1548 = vmatprep.subr.bf16.mxu0 0
        %1549 = vmatpush1.bf16.msra.mxu0 %v1386
        %1550 = vmatprep.mubr.bf16.mxu0 %v968
        %1551 = vmatmul.mubr.bf16.gmra.mrb[0].mxu0 %v967
        %v1552 = vpop.f32.mrb[0].mxu0
        %v1553 = vadd.f32 %v613, %v1552
        %v1554 = vpop.f32.mrb[0].mxu0
        %v1555 = vpop.f32.mrb[0].mxu0
        %v1556 = vadd.f32 %v613, %v1555
        %v1557 = vpop.f32.mrb[0].mxu0
        %1558 = vmatprep.mubr.bf16.mxu0 %v975
        %1559 = vmatmul.mubr.bf16.gmra.mrb[0].mxu0 %v974
        %v1560 = vpop.f32.mrb[0].mxu0
        %v1561 = vadd.f32 %v613, %v1560
        %v1562 = vpop.f32.mrb[0].mxu0
        %v1563 = vpop.f32.mrb[0].mxu0
        %v1564 = vadd.f32 %v613, %v1563
        %v1565 = vpop.f32.mrb[0].mxu0
        %1566 = vmatprep.mubr.bf16.mxu0 %v982
        %1567 = vmatmul.mubr.bf16.gmra.mrb[0].mxu0 %v981
        %v1568 = vpop.f32.mrb[0].mxu0
        %v1569 = vadd.f32 %v613, %v1568
        %v1570 = vpop.f32.mrb[0].mxu0
        %v1571 = vpop.f32.mrb[0].mxu0
        %v1572 = vadd.f32 %v613, %v1571
        %v1573 = vpop.f32.mrb[0].mxu0
        %1574 = vmatprep.mubr.bf16.mxu0 %v989
        %1575 = vmatmul.mubr.bf16.gmra.mrb[0].mxu0 %v988
        %v1576 = vpop.f32.mrb[0].mxu0
        %v1577 = vadd.f32 %v613, %v1576
        %v1578 = vpop.f32.mrb[0].mxu0
        %v1579 = vpop.f32.mrb[0].mxu0
        %v1580 = vadd.f32 %v613, %v1579
        %v1581 = vpop.f32.mrb[0].mxu0
        %1582 = vmatprep.mubr.bf16.mxu0 %v996
        %1583 = vmatmul.mubr.bf16.gmra.mrb[0].mxu0 %v995
        %v1584 = vpop.f32.mrb[0].mxu0
        %v1585 = vadd.f32 %v613, %v1584
        %v1586 = vpop.f32.mrb[0].mxu0
        %v1587 = vpop.f32.mrb[0].mxu0
        %v1588 = vadd.f32 %v613, %v1587
        %v1589 = vpop.f32.mrb[0].mxu0
        %1590 = vmatprep.mubr.bf16.mxu0 %v1003
        %1591 = vmatmul.mubr.bf16.gmra.mrb[0].mxu0 %v1002
        %v1592 = vpop.f32.mrb[0].mxu0
        %v1593 = vadd.f32 %v613, %v1592
        %v1594 = vpop.f32.mrb[0].mxu0
        %v1595 = vpop.f32.mrb[0].mxu0
        %v1596 = vadd.f32 %v613, %v1595
        %v1597 = vpop.f32.mrb[0].mxu0
        %1598 = vmatprep.mubr.bf16.mxu0 %v1010
        %1599 = vmatmul.mubr.bf16.gmra.mrb[0].mxu0 %v1009
        %v1600 = vpop.f32.mrb[0].mxu0
        %v1601 = vadd.f32 %v613, %v1600
        %v1602 = vpop.f32.mrb[0].mxu0
        %v1603 = vpop.f32.mrb[0].mxu0
        %v1604 = vadd.f32 %v613, %v1603
        %v1605 = vpop.f32.mrb[0].mxu0
        %1606 = vmatprep.mubr.bf16.mxu0 %v1017
        %1607 = vmatmul.mubr.bf16.gmra.mrb[0].mxu0 %v1016
        %v1608 = vpop.f32.mrb[0].mxu0
        %v1609 = vadd.f32 %v613, %v1608
        %v1610 = vpop.f32.mrb[0].mxu0
        %v1611 = vpop.f32.mrb[0].mxu0
        %v1612 = vadd.f32 %v613, %v1611
        %v1613 = vpop.f32.mrb[0].mxu0
        %1614 = vmatprep.mubr.bf16.mxu0 %v1024
        %1615 = vmatmul.mubr.bf16.gmra.mrb[0].mxu0 %v1023
        %v1616 = vpop.f32.mrb[0].mxu0
        %v1617 = vadd.f32 %v613, %v1616
        %v1618 = vpop.f32.mrb[0].mxu0
        %v1619 = vpop.f32.mrb[0].mxu0
        %v1620 = vadd.f32 %v613, %v1619
        %v1621 = vpop.f32.mrb[0].mxu0
        %1622 = vmatprep.mubr.bf16.mxu0 %v1031
        %1623 = vmatmul.mubr.bf16.gmra.mrb[0].mxu0 %v1030
        %v1624 = vpop.f32.mrb[0].mxu0
        %v1625 = vadd.f32 %v613, %v1624
        %v1626 = vpop.f32.mrb[0].mxu0
        %v1627 = vpop.f32.mrb[0].mxu0
        %v1628 = vadd.f32 %v613, %v1627
        %v1629 = vpop.f32.mrb[0].mxu0
        %1630 = vmatprep.mubr.bf16.mxu0 %v1038
        %1631 = vmatmul.mubr.bf16.gmra.mrb[0].mxu0 %v1037
        %v1632 = vpop.f32.mrb[0].mxu0
        %v1633 = vadd.f32 %v613, %v1632
        %v1634 = vpop.f32.mrb[0].mxu0
        %v1635 = vpop.f32.mrb[0].mxu0
        %v1636 = vadd.f32 %v613, %v1635
        %v1637 = vpop.f32.mrb[0].mxu0
        %1638 = vmatprep.mubr.bf16.mxu0 %v1045
        %1639 = vmatmul.mubr.bf16.gmra.mrb[0].mxu0 %v1044
        %v1640 = vpop.f32.mrb[0].mxu0
        %v1641 = vadd.f32 %v613, %v1640
        %v1642 = vpop.f32.mrb[0].mxu0
        %v1643 = vpop.f32.mrb[0].mxu0
        %v1644 = vadd.f32 %v613, %v1643
        %v1645 = vpop.f32.mrb[0].mxu0
        %1646 = vmatprep.mubr.bf16.mxu0 %v1052
        %1647 = vmatmul.mubr.bf16.gmra.mrb[0].mxu0 %v1051
        %v1648 = vpop.f32.mrb[0].mxu0
        %v1649 = vadd.f32 %v613, %v1648
        %v1650 = vpop.f32.mrb[0].mxu0
        %v1651 = vpop.f32.mrb[0].mxu0
        %v1652 = vadd.f32 %v613, %v1651
        %v1653 = vpop.f32.mrb[0].mxu0
        %1654 = vmatprep.mubr.bf16.mxu0 %v1059
        %1655 = vmatmul.mubr.bf16.gmra.mrb[0].mxu0 %v1058
        %v1656 = vpop.f32.mrb[0].mxu0
        %v1657 = vadd.f32 %v613, %v1656
        %v1658 = vpop.f32.mrb[0].mxu0
        %v1659 = vpop.f32.mrb[0].mxu0
        %v1660 = vadd.f32 %v613, %v1659
        %v1661 = vpop.f32.mrb[0].mxu0
        %1662 = vmatprep.mubr.bf16.mxu0 %v1066
        %1663 = vmatmul.mubr.bf16.gmra.mrb[0].mxu0 %v1065
        %v1664 = vpop.f32.mrb[0].mxu0
        %v1665 = vadd.f32 %v613, %v1664
        %v1666 = vpop.f32.mrb[0].mxu0
        %v1667 = vpop.f32.mrb[0].mxu0
        %v1668 = vadd.f32 %v613, %v1667
        %v1669 = vpop.f32.mrb[0].mxu0
        %1670 = vmatprep.mubr.bf16.mxu0 %v1073
        %1671 = vmatmul.mubr.bf16.gmra.mrb[0].mxu0 %v1072
        %v1672 = vpop.f32.mrb[0].mxu0
        %v1673 = vadd.f32 %v613, %v1672
        %v1674 = vpop.f32.mrb[0].mxu0
        %v1675 = vpop.f32.mrb[0].mxu0
        %v1676 = vadd.f32 %v613, %v1675
        %v1677 = vpop.f32.mrb[0].mxu0
        %1678 = vdwg.mxu0
        %1679 = vmatprep.subr.bf16.mxu0 0
        %1680 = vmatpush1.bf16.msra.mxu0 %v1387
        %1681 = vmatprep.subr.bf16.mxu0 0
        %1682 = vmatpush1.bf16.msra.mxu0 %v1388
        %1683 = vmatprep.subr.bf16.mxu0 0
        %1684 = vmatpush1.bf16.msra.mxu0 %v1389
        %1685 = vmatprep.subr.bf16.mxu0 0
        %1686 = vmatpush1.bf16.msra.mxu0 %v1390
        %1687 = vmatprep.subr.bf16.mxu0 0
        %1688 = vmatpush1.bf16.msra.mxu0 %v1391
        %1689 = vmatprep.subr.bf16.mxu0 0
        %1690 = vmatpush1.bf16.msra.mxu0 %v1392
        %1691 = vmatprep.subr.bf16.mxu0 0
        %1692 = vmatpush1.bf16.msra.mxu0 %v1393
        %1693 = vmatprep.subr.bf16.mxu0 0
        %1694 = vmatpush1.bf16.msra.mxu0 %v1394
        %1695 = vmatprep.subr.bf16.mxu0 0
        %1696 = vmatpush1.bf16.msra.mxu0 %v1395
        %1697 = vmatprep.subr.bf16.mxu0 0
        %1698 = vmatpush1.bf16.msra.mxu0 %v1396
        %1699 = vmatprep.subr.bf16.mxu0 0
        %1700 = vmatpush1.bf16.msra.mxu0 %v1397
        %1701 = vmatprep.subr.bf16.mxu0 0
        %1702 = vmatpush1.bf16.msra.mxu0 %v1398
        %1703 = vmatprep.subr.bf16.mxu0 0
        %1704 = vmatpush1.bf16.msra.mxu0 %v1399
        %1705 = vmatprep.subr.bf16.mxu0 0
        %1706 = vmatpush1.bf16.msra.mxu0 %v1400
        %1707 = vmatprep.subr.bf16.mxu0 0
        %1708 = vmatpush1.bf16.msra.mxu0 %v1401
        %1709 = vmatprep.subr.bf16.mxu0 0
        %1710 = vmatpush1.bf16.msra.mxu0 %v1402
        %1711 = vmatprep.mubr.bf16.mxu0 %v970
        %1712 = vmatmul.mubr.bf16.gmra.mrb[0].mxu0 %v969
        %v1713 = vpop.f32.mrb[0].mxu0
        %v1714 = vadd.f32 %v1553, %v1713
        %v1715 = vpop.f32.mrb[0].mxu0
        %v1716 = vpop.f32.mrb[0].mxu0
        %v1717 = vadd.f32 %v1556, %v1716
        %v1718 = vpop.f32.mrb[0].mxu0
        %1719 = vmatprep.mubr.bf16.mxu0 %v977
        %1720 = vmatmul.mubr.bf16.gmra.mrb[0].mxu0 %v976
        %v1721 = vpop.f32.mrb[0].mxu0
        %v1722 = vadd.f32 %v1561, %v1721
        %v1723 = vpop.f32.mrb[0].mxu0
        %v1724 = vpop.f32.mrb[0].mxu0
        %v1725 = vadd.f32 %v1564, %v1724
        %v1726 = vpop.f32.mrb[0].mxu0
        %1727 = vmatprep.mubr.bf16.mxu0 %v984
        %1728 = vmatmul.mubr.bf16.gmra.mrb[0].mxu0 %v983
        %v1729 = vpop.f32.mrb[0].mxu0
        %v1730 = vadd.f32 %v1569, %v1729
        %v1731 = vpop.f32.mrb[0].mxu0
        %v1732 = vpop.f32.mrb[0].mxu0
        %v1733 = vadd.f32 %v1572, %v1732
        %v1734 = vpop.f32.mrb[0].mxu0
        %1735 = vmatprep.mubr.bf16.mxu0 %v991
        %1736 = vmatmul.mubr.bf16.gmra.mrb[0].mxu0 %v990
        %v1737 = vpop.f32.mrb[0].mxu0
        %v1738 = vadd.f32 %v1577, %v1737
        %v1739 = vpop.f32.mrb[0].mxu0
        %v1740 = vpop.f32.mrb[0].mxu0
        %v1741 = vadd.f32 %v1580, %v1740
        %v1742 = vpop.f32.mrb[0].mxu0
        %1743 = vmatprep.mubr.bf16.mxu0 %v998
        %1744 = vmatmul.mubr.bf16.gmra.mrb[0].mxu0 %v997
        %v1745 = vpop.f32.mrb[0].mxu0
        %v1746 = vadd.f32 %v1585, %v1745
        %v1747 = vpop.f32.mrb[0].mxu0
        %v1748 = vpop.f32.mrb[0].mxu0
        %v1749 = vadd.f32 %v1588, %v1748
        %v1750 = vpop.f32.mrb[0].mxu0
        %1751 = vmatprep.mubr.bf16.mxu0 %v1005
        %1752 = vmatmul.mubr.bf16.gmra.mrb[0].mxu0 %v1004
        %v1753 = vpop.f32.mrb[0].mxu0
        %v1754 = vadd.f32 %v1593, %v1753
        %v1755 = vpop.f32.mrb[0].mxu0
        %v1756 = vpop.f32.mrb[0].mxu0
        %v1757 = vadd.f32 %v1596, %v1756
        %v1758 = vpop.f32.mrb[0].mxu0
        %1759 = vmatprep.mubr.bf16.mxu0 %v1012
        %1760 = vmatmul.mubr.bf16.gmra.mrb[0].mxu0 %v1011
        %v1761 = vpop.f32.mrb[0].mxu0
        %v1762 = vadd.f32 %v1601, %v1761
        %v1763 = vpop.f32.mrb[0].mxu0
        %v1764 = vpop.f32.mrb[0].mxu0
        %v1765 = vadd.f32 %v1604, %v1764
        %v1766 = vpop.f32.mrb[0].mxu0
        %1767 = vmatprep.mubr.bf16.mxu0 %v1019
        %1768 = vmatmul.mubr.bf16.gmra.mrb[0].mxu0 %v1018
        %v1769 = vpop.f32.mrb[0].mxu0
        %v1770 = vadd.f32 %v1609, %v1769
        %v1771 = vpop.f32.mrb[0].mxu0
        %v1772 = vpop.f32.mrb[0].mxu0
        %v1773 = vadd.f32 %v1612, %v1772
        %v1774 = vpop.f32.mrb[0].mxu0
        %1775 = vmatprep.mubr.bf16.mxu0 %v1026
        %1776 = vmatmul.mubr.bf16.gmra.mrb[0].mxu0 %v1025
        %v1777 = vpop.f32.mrb[0].mxu0
        %v1778 = vadd.f32 %v1617, %v1777
        %v1779 = vpop.f32.mrb[0].mxu0
        %v1780 = vpop.f32.mrb[0].mxu0
        %v1781 = vadd.f32 %v1620, %v1780
        %v1782 = vpop.f32.mrb[0].mxu0
        %1783 = vmatprep.mubr.bf16.mxu0 %v1033
        %1784 = vmatmul.mubr.bf16.gmra.mrb[0].mxu0 %v1032
        %v1785 = vpop.f32.mrb[0].mxu0
        %v1786 = vadd.f32 %v1625, %v1785
        %v1787 = vpop.f32.mrb[0].mxu0
        %v1788 = vpop.f32.mrb[0].mxu0
        %v1789 = vadd.f32 %v1628, %v1788
        %v1790 = vpop.f32.mrb[0].mxu0
        %1791 = vmatprep.mubr.bf16.mxu0 %v1040
        %1792 = vmatmul.mubr.bf16.gmra.mrb[0].mxu0 %v1039
        %v1793 = vpop.f32.mrb[0].mxu0
        %v1794 = vadd.f32 %v1633, %v1793
        %v1795 = vpop.f32.mrb[0].mxu0
        %v1796 = vpop.f32.mrb[0].mxu0
        %v1797 = vadd.f32 %v1636, %v1796
        %v1798 = vpop.f32.mrb[0].mxu0
        %1799 = vmatprep.mubr.bf16.mxu0 %v1047
        %1800 = vmatmul.mubr.bf16.gmra.mrb[0].mxu0 %v1046
        %v1801 = vpop.f32.mrb[0].mxu0
        %v1802 = vadd.f32 %v1641, %v1801
        %v1803 = vpop.f32.mrb[0].mxu0
        %v1804 = vpop.f32.mrb[0].mxu0
        %v1805 = vadd.f32 %v1644, %v1804
        %v1806 = vpop.f32.mrb[0].mxu0
        %1807 = vmatprep.mubr.bf16.mxu0 %v1054
        %1808 = vmatmul.mubr.bf16.gmra.mrb[0].mxu0 %v1053
        %v1809 = vpop.f32.mrb[0].mxu0
        %v1810 = vadd.f32 %v1649, %v1809
        %v1811 = vpop.f32.mrb[0].mxu0
        %v1812 = vpop.f32.mrb[0].mxu0
        %v1813 = vadd.f32 %v1652, %v1812
        %v1814 = vpop.f32.mrb[0].mxu0
        %1815 = vmatprep.mubr.bf16.mxu0 %v1061
        %1816 = vmatmul.mubr.bf16.gmra.mrb[0].mxu0 %v1060
        %v1817 = vpop.f32.mrb[0].mxu0
        %v1818 = vadd.f32 %v1657, %v1817
        %v1819 = vpop.f32.mrb[0].mxu0
        %v1820 = vpop.f32.mrb[0].mxu0
        %v1821 = vadd.f32 %v1660, %v1820
        %v1822 = vpop.f32.mrb[0].mxu0
        %1823 = vmatprep.mubr.bf16.mxu0 %v1068
        %1824 = vmatmul.mubr.bf16.gmra.mrb[0].mxu0 %v1067
        %v1825 = vpop.f32.mrb[0].mxu0
        %v1826 = vadd.f32 %v1665, %v1825
        %v1827 = vpop.f32.mrb[0].mxu0
        %v1828 = vpop.f32.mrb[0].mxu0
        %v1829 = vadd.f32 %v1668, %v1828
        %v1830 = vpop.f32.mrb[0].mxu0
        %1831 = vmatprep.mubr.bf16.mxu0 %v1075
        %1832 = vmatmul.mubr.bf16.gmra.mrb[0].mxu0 %v1074
        %v1833 = vpop.f32.mrb[0].mxu0
        %v1834 = vadd.f32 %v1673, %v1833
        %v1835 = vpop.f32.mrb[0].mxu0
        %v1836 = vpop.f32.mrb[0].mxu0
        %v1837 = vadd.f32 %v1676, %v1836
        %v1838 = vpop.f32.mrb[0].mxu0
        %1839 = vdwg.mxu0
        %1840 = vmatprep.subr.bf16.mxu0 0
        %1841 = vmatpush1.bf16.msra.mxu0 %v1403
        %1842 = vmatprep.subr.bf16.mxu0 0
        %1843 = vmatpush1.bf16.msra.mxu0 %v1404
        %1844 = vmatprep.subr.bf16.mxu0 0
        %1845 = vmatpush1.bf16.msra.mxu0 %v1405
        %1846 = vmatprep.subr.bf16.mxu0 0
        %1847 = vmatpush1.bf16.msra.mxu0 %v1406
        %1848 = vmatprep.subr.bf16.mxu0 0
        %1849 = vmatpush1.bf16.msra.mxu0 %v1407
        %1850 = vmatprep.subr.bf16.mxu0 0
        %1851 = vmatpush1.bf16.msra.mxu0 %v1408
        %1852 = vmatprep.subr.bf16.mxu0 0
        %1853 = vmatpush1.bf16.msra.mxu0 %v1409
        %1854 = vmatprep.subr.bf16.mxu0 0
        %1855 = vmatpush1.bf16.msra.mxu0 %v1410
        %1856 = vmatprep.subr.bf16.mxu0 0
        %1857 = vmatpush1.bf16.msra.mxu0 %v1411
        %1858 = vmatprep.subr.bf16.mxu0 0
        %1859 = vmatpush1.bf16.msra.mxu0 %v1412
        %1860 = vmatprep.subr.bf16.mxu0 0
        %1861 = vmatpush1.bf16.msra.mxu0 %v1413
        %1862 = vmatprep.subr.bf16.mxu0 0
        %1863 = vmatpush1.bf16.msra.mxu0 %v1414
        %1864 = vmatprep.subr.bf16.mxu0 0
        %1865 = vmatpush1.bf16.msra.mxu0 %v1415
        %1866 = vmatprep.subr.bf16.mxu0 0
        %1867 = vmatpush1.bf16.msra.mxu0 %v1416
        %1868 = vmatprep.subr.bf16.mxu0 0
        %1869 = vmatpush1.bf16.msra.mxu0 %v1417
        %1870 = vmatprep.subr.bf16.mxu0 0
        %1871 = vmatpush1.bf16.msra.mxu0 %v1418
        %1872 = vmatprep.mubr.bf16.mxu0 %v972
        %1873 = vmatmul.mubr.bf16.gmra.mrb[0].mxu0 %v971
        %v1874 = vpop.f32.mrb[0].mxu0
        %v1875 = vadd.f32 %v1714, %v1874
        %v1876 = vpop.f32.mrb[0].mxu0
        %v1877 = vpop.f32.mrb[0].mxu0
        %v1878 = vadd.f32 %v1717, %v1877
        %v1879 = vpop.f32.mrb[0].mxu0
        %1880 = vmatprep.mubr.bf16.mxu0 %v979
        %1881 = vmatmul.mubr.bf16.gmra.mrb[0].mxu0 %v978
        %v1882 = vpop.f32.mrb[0].mxu0
        %v1883 = vadd.f32 %v1722, %v1882
        %v1884 = vpop.f32.mrb[0].mxu0
        %v1885 = vpop.f32.mrb[0].mxu0
        %v1886 = vadd.f32 %v1725, %v1885
        %v1887 = vpop.f32.mrb[0].mxu0
        %1888 = vmatprep.mubr.bf16.mxu0 %v986
        %1889 = vmatmul.mubr.bf16.gmra.mrb[0].mxu0 %v985
        %v1890 = vpop.f32.mrb[0].mxu0
        %v1891 = vadd.f32 %v1730, %v1890
        %v1892 = vpop.f32.mrb[0].mxu0
        %v1893 = vpop.f32.mrb[0].mxu0
        %v1894 = vadd.f32 %v1733, %v1893
        %v1895 = vpop.f32.mrb[0].mxu0
        %1896 = vmatprep.mubr.bf16.mxu0 %v993
        %1897 = vmatmul.mubr.bf16.gmra.mrb[0].mxu0 %v992
        %v1898 = vpop.f32.mrb[0].mxu0
        %v1899 = vadd.f32 %v1738, %v1898
        %v1900 = vpop.f32.mrb[0].mxu0
        %v1901 = vpop.f32.mrb[0].mxu0
        %v1902 = vadd.f32 %v1741, %v1901
        %v1903 = vpop.f32.mrb[0].mxu0
        %1904 = vmatprep.mubr.bf16.mxu0 %v1000
        %1905 = vmatmul.mubr.bf16.gmra.mrb[0].mxu0 %v999
        %v1906 = vpop.f32.mrb[0].mxu0
        %v1907 = vadd.f32 %v1746, %v1906
        %v1908 = vpop.f32.mrb[0].mxu0
        %v1909 = vpop.f32.mrb[0].mxu0
        %v1910 = vadd.f32 %v1749, %v1909
        %v1911 = vpop.f32.mrb[0].mxu0
        %1912 = vmatprep.mubr.bf16.mxu0 %v1007
        %1913 = vmatmul.mubr.bf16.gmra.mrb[0].mxu0 %v1006
        %v1914 = vpop.f32.mrb[0].mxu0
        %v1915 = vadd.f32 %v1754, %v1914
        %v1916 = vpop.f32.mrb[0].mxu0
        %v1917 = vpop.f32.mrb[0].mxu0
        %v1918 = vadd.f32 %v1757, %v1917
        %v1919 = vpop.f32.mrb[0].mxu0
        %1920 = vmatprep.mubr.bf16.mxu0 %v1014
        %1921 = vmatmul.mubr.bf16.gmra.mrb[0].mxu0 %v1013
        %v1922 = vpop.f32.mrb[0].mxu0
        %v1923 = vadd.f32 %v1762, %v1922
        %v1924 = vpop.f32.mrb[0].mxu0
        %v1925 = vpop.f32.mrb[0].mxu0
        %v1926 = vadd.f32 %v1765, %v1925
        %v1927 = vpop.f32.mrb[0].mxu0
        %1928 = vmatprep.mubr.bf16.mxu0 %v1021
        %1929 = vmatmul.mubr.bf16.gmra.mrb[0].mxu0 %v1020
        %v1930 = vpop.f32.mrb[0].mxu0
        %v1931 = vadd.f32 %v1770, %v1930
        %v1932 = vpop.f32.mrb[0].mxu0
        %v1933 = vpop.f32.mrb[0].mxu0
        %v1934 = vadd.f32 %v1773, %v1933
        %v1935 = vpop.f32.mrb[0].mxu0
        %1936 = vmatprep.mubr.bf16.mxu0 %v1028
        %1937 = vmatmul.mubr.bf16.gmra.mrb[0].mxu0 %v1027
        %v1938 = vpop.f32.mrb[0].mxu0
        %v1939 = vadd.f32 %v1778, %v1938
        %v1940 = vpop.f32.mrb[0].mxu0
        %v1941 = vpop.f32.mrb[0].mxu0
        %v1942 = vadd.f32 %v1781, %v1941
        %v1943 = vpop.f32.mrb[0].mxu0
        %1944 = vmatprep.mubr.bf16.mxu0 %v1035
        %1945 = vmatmul.mubr.bf16.gmra.mrb[0].mxu0 %v1034
        %v1946 = vpop.f32.mrb[0].mxu0
        %v1947 = vadd.f32 %v1786, %v1946
        %v1948 = vpop.f32.mrb[0].mxu0
        %v1949 = vpop.f32.mrb[0].mxu0
        %v1950 = vadd.f32 %v1789, %v1949
        %v1951 = vpop.f32.mrb[0].mxu0
        %1952 = vmatprep.mubr.bf16.mxu0 %v1042
        %1953 = vmatmul.mubr.bf16.gmra.mrb[0].mxu0 %v1041
        %v1954 = vpop.f32.mrb[0].mxu0
        %v1955 = vadd.f32 %v1794, %v1954
        %v1956 = vpop.f32.mrb[0].mxu0
        %v1957 = vpop.f32.mrb[0].mxu0
        %v1958 = vadd.f32 %v1797, %v1957
        %v1959 = vpop.f32.mrb[0].mxu0
        %1960 = vmatprep.mubr.bf16.mxu0 %v1049
        %1961 = vmatmul.mubr.bf16.gmra.mrb[0].mxu0 %v1048
        %v1962 = vpop.f32.mrb[0].mxu0
        %v1963 = vadd.f32 %v1802, %v1962
        %v1964 = vpop.f32.mrb[0].mxu0
        %v1965 = vpop.f32.mrb[0].mxu0
        %v1966 = vadd.f32 %v1805, %v1965
        %v1967 = vpop.f32.mrb[0].mxu0
        %1968 = vmatprep.mubr.bf16.mxu0 %v1056
        %1969 = vmatmul.mubr.bf16.gmra.mrb[0].mxu0 %v1055
        %v1970 = vpop.f32.mrb[0].mxu0
        %v1971 = vadd.f32 %v1810, %v1970
        %v1972 = vpop.f32.mrb[0].mxu0
        %v1973 = vpop.f32.mrb[0].mxu0
        %v1974 = vadd.f32 %v1813, %v1973
        %v1975 = vpop.f32.mrb[0].mxu0
        %1976 = vmatprep.mubr.bf16.mxu0 %v1063
        %1977 = vmatmul.mubr.bf16.gmra.mrb[0].mxu0 %v1062
        %v1978 = vpop.f32.mrb[0].mxu0
        %v1979 = vadd.f32 %v1818, %v1978
        %v1980 = vpop.f32.mrb[0].mxu0
        %v1981 = vpop.f32.mrb[0].mxu0
        %v1982 = vadd.f32 %v1821, %v1981
        %v1983 = vpop.f32.mrb[0].mxu0
        %1984 = vmatprep.mubr.bf16.mxu0 %v1070
        %1985 = vmatmul.mubr.bf16.gmra.mrb[0].mxu0 %v1069
        %v1986 = vpop.f32.mrb[0].mxu0
        %v1987 = vadd.f32 %v1826, %v1986
        %v1988 = vpop.f32.mrb[0].mxu0
        %v1989 = vpop.f32.mrb[0].mxu0
        %v1990 = vadd.f32 %v1829, %v1989
        %v1991 = vpop.f32.mrb[0].mxu0
        %1992 = vmatprep.mubr.bf16.mxu0 %v1077
        %1993 = vmatmul.mubr.bf16.gmra.mrb[0].mxu0 %v1076
        %v1994 = vpop.f32.mrb[0].mxu0
        %v1995 = vadd.f32 %v1834, %v1994
        %v1996 = vpop.f32.mrb[0].mxu0
        %v1997 = vpop.f32.mrb[0].mxu0
        %v1998 = vadd.f32 %v1837, %v1997
        %v1999 = vpop.f32.mrb[0].mxu0
        %2000 = vdwg.mxu0
        %2001 = vmatprep.subr.bf16.mxu0 0
        %2002 = vmatpush1.bf16.msra.mxu0 %v1419
        %2003 = vmatprep.subr.bf16.mxu0 0
        %2004 = vmatpush1.bf16.msra.mxu0 0
        %2005 = vmatprep.subr.bf16.mxu0 0
        %2006 = vmatpush1.bf16.msra.mxu0 0
        %2007 = vmatprep.subr.bf16.mxu0 0
        %2008 = vmatpush1.bf16.msra.mxu0 0
        %2009 = vmatprep.subr.bf16.mxu0 0
        %2010 = vmatpush1.bf16.msra.mxu0 0
        %2011 = vmatprep.subr.bf16.mxu0 0
        %2012 = vmatpush1.bf16.msra.mxu0 0
        %2013 = vmatprep.subr.bf16.mxu0 0
        %2014 = vmatpush1.bf16.msra.mxu0 0
        %2015 = vmatprep.subr.bf16.mxu0 0
        %2016 = vmatpush1.bf16.msra.mxu0 0
        %2017 = vmatprep.subr.bf16.mxu0 0
        %2018 = vmatpush1.bf16.msra.mxu0 0
        %2019 = vmatprep.subr.bf16.mxu0 0
        %2020 = vmatpush1.bf16.msra.mxu0 0
        %2021 = vmatprep.subr.bf16.mxu0 0
        %2022 = vmatpush1.bf16.msra.mxu0 0
        %2023 = vmatprep.subr.bf16.mxu0 0
        %2024 = vmatpush1.bf16.msra.mxu0 0
        %2025 = vmatprep.subr.bf16.mxu0 0
        %2026 = vmatpush1.bf16.msra.mxu0 0
        %2027 = vmatprep.subr.bf16.mxu0 0
        %2028 = vmatpush1.bf16.msra.mxu0 0
        %2029 = vmatprep.subr.bf16.mxu0 0
        %2030 = vmatpush1.bf16.msra.mxu0 0
        %2031 = vmatprep.subr.bf16.mxu0 0
        %2032 = vmatpush1.bf16.msra.mxu0 0
        %2033 = vmatprep.mubr.bf16.mxu0 0
        %2034 = vmatmul.mubr.bf16.gmra.mrb[0].mxu0 %v1471
        %v2035 = vpop.f32.mrb[0].mxu0
        %v2036 = vadd.f32 %v1875, %v2035
        %v2037 = vpop.f32.mrb[0].mxu0
        %v2038 = vpop.f32.mrb[0].mxu0
        %v2039 = vadd.f32 %v1878, %v2038
        %v2040 = vpop.f32.mrb[0].mxu0
        %2041 = vmatprep.mubr.bf16.mxu0 0
        %2042 = vmatmul.mubr.bf16.gmra.mrb[0].mxu0 %v1474
        %v2043 = vpop.f32.mrb[0].mxu0
        %v2044 = vadd.f32 %v1883, %v2043
        %v2045 = vpop.f32.mrb[0].mxu0
        %v2046 = vpop.f32.mrb[0].mxu0
        %v2047 = vadd.f32 %v1886, %v2046
        %v2048 = vpop.f32.mrb[0].mxu0
        %2049 = vmatprep.mubr.bf16.mxu0 0
        %2050 = vmatmul.mubr.bf16.gmra.mrb[0].mxu0 %v1477
        %v2051 = vpop.f32.mrb[0].mxu0
        %v2052 = vadd.f32 %v1891, %v2051
        %v2053 = vpop.f32.mrb[0].mxu0
        %v2054 = vpop.f32.mrb[0].mxu0
        %v2055 = vadd.f32 %v1894, %v2054
        %v2056 = vpop.f32.mrb[0].mxu0
        %2057 = vmatprep.mubr.bf16.mxu0 0
        %2058 = vmatmul.mubr.bf16.gmra.mrb[0].mxu0 %v1480
        %v2059 = vpop.f32.mrb[0].mxu0
        %v2060 = vadd.f32 %v1899, %v2059
        %v2061 = vpop.f32.mrb[0].mxu0
        %v2062 = vpop.f32.mrb[0].mxu0
        %v2063 = vadd.f32 %v1902, %v2062
        %v2064 = vpop.f32.mrb[0].mxu0
        %2065 = vmatprep.mubr.bf16.mxu0 0
        %2066 = vmatmul.mubr.bf16.gmra.mrb[0].mxu0 %v1483
        %v2067 = vpop.f32.mrb[0].mxu0
        %v2068 = vadd.f32 %v1907, %v2067
        %v2069 = vpop.f32.mrb[0].mxu0
        %v2070 = vpop.f32.mrb[0].mxu0
        %v2071 = vadd.f32 %v1910, %v2070
        %v2072 = vpop.f32.mrb[0].mxu0
        %2073 = vmatprep.mubr.bf16.mxu0 0
        %2074 = vmatmul.mubr.bf16.gmra.mrb[0].mxu0 %v1486
        %v2075 = vpop.f32.mrb[0].mxu0
        %v2076 = vadd.f32 %v1915, %v2075
        %v2077 = vpop.f32.mrb[0].mxu0
        %v2078 = vpop.f32.mrb[0].mxu0
        %v2079 = vadd.f32 %v1918, %v2078
        %v2080 = vpop.f32.mrb[0].mxu0
        %2081 = vmatprep.mubr.bf16.mxu0 0
        %2082 = vmatmul.mubr.bf16.gmra.mrb[0].mxu0 %v1489
        %v2083 = vpop.f32.mrb[0].mxu0
        %v2084 = vadd.f32 %v1923, %v2083
        %v2085 = vpop.f32.mrb[0].mxu0
        %v2086 = vpop.f32.mrb[0].mxu0
        %v2087 = vadd.f32 %v1926, %v2086
        %v2088 = vpop.f32.mrb[0].mxu0
        %2089 = vmatprep.mubr.bf16.mxu0 0
        %2090 = vmatmul.mubr.bf16.gmra.mrb[0].mxu0 %v1492
        %v2091 = vpop.f32.mrb[0].mxu0
        %v2092 = vadd.f32 %v1931, %v2091
        %v2093 = vpop.f32.mrb[0].mxu0
        %v2094 = vpop.f32.mrb[0].mxu0
        %v2095 = vadd.f32 %v1934, %v2094
        %v2096 = vpop.f32.mrb[0].mxu0
        %2097 = vmatprep.mubr.bf16.mxu0 0
        %2098 = vmatmul.mubr.bf16.gmra.mrb[0].mxu0 %v1495
        %v2099 = vpop.f32.mrb[0].mxu0
        %v2100 = vadd.f32 %v1939, %v2099
        %v2101 = vpop.f32.mrb[0].mxu0
        %v2102 = vpop.f32.mrb[0].mxu0
        %v2103 = vadd.f32 %v1942, %v2102
        %v2104 = vpop.f32.mrb[0].mxu0
        %2105 = vmatprep.mubr.bf16.mxu0 0
        %2106 = vmatmul.mubr.bf16.gmra.mrb[0].mxu0 %v1498
        %v2107 = vpop.f32.mrb[0].mxu0
        %v2108 = vadd.f32 %v1947, %v2107
        %v2109 = vpop.f32.mrb[0].mxu0
        %v2110 = vpop.f32.mrb[0].mxu0
        %v2111 = vadd.f32 %v1950, %v2110
        %v2112 = vpop.f32.mrb[0].mxu0
        %2113 = vmatprep.mubr.bf16.mxu0 0
        %2114 = vmatmul.mubr.bf16.gmra.mrb[0].mxu0 %v1501
        %v2115 = vpop.f32.mrb[0].mxu0
        %v2116 = vadd.f32 %v1955, %v2115
        %v2117 = vpop.f32.mrb[0].mxu0
        %v2118 = vpop.f32.mrb[0].mxu0
        %v2119 = vadd.f32 %v1958, %v2118
        %v2120 = vpop.f32.mrb[0].mxu0
        %2121 = vmatprep.mubr.bf16.mxu0 0
        %2122 = vmatmul.mubr.bf16.gmra.mrb[0].mxu0 %v1504
        %v2123 = vpop.f32.mrb[0].mxu0
        %v2124 = vadd.f32 %v1963, %v2123
        %v2125 = vpop.f32.mrb[0].mxu0
        %v2126 = vpop.f32.mrb[0].mxu0
        %v2127 = vadd.f32 %v1966, %v2126
        %v2128 = vpop.f32.mrb[0].mxu0
        %2129 = vmatprep.mubr.bf16.mxu0 0
        %2130 = vmatmul.mubr.bf16.gmra.mrb[0].mxu0 %v1507
        %v2131 = vpop.f32.mrb[0].mxu0
        %v2132 = vadd.f32 %v1971, %v2131
        %v2133 = vpop.f32.mrb[0].mxu0
        %v2134 = vpop.f32.mrb[0].mxu0
        %v2135 = vadd.f32 %v1974, %v2134
        %v2136 = vpop.f32.mrb[0].mxu0
        %2137 = vmatprep.mubr.bf16.mxu0 0
        %2138 = vmatmul.mubr.bf16.gmra.mrb[0].mxu0 %v1510
        %v2139 = vpop.f32.mrb[0].mxu0
        %v2140 = vadd.f32 %v1979, %v2139
        %v2141 = vpop.f32.mrb[0].mxu0
        %v2142 = vpop.f32.mrb[0].mxu0
        %v2143 = vadd.f32 %v1982, %v2142
        %v2144 = vpop.f32.mrb[0].mxu0
        %2145 = vmatprep.mubr.bf16.mxu0 0
        %2146 = vmatmul.mubr.bf16.gmra.mrb[0].mxu0 %v1513
        %v2147 = vpop.f32.mrb[0].mxu0
        %v2148 = vadd.f32 %v1987, %v2147
        %v2149 = vpop.f32.mrb[0].mxu0
        %v2150 = vpop.f32.mrb[0].mxu0
        %v2151 = vadd.f32 %v1990, %v2150
        %v2152 = vpop.f32.mrb[0].mxu0
        %2153 = vmatprep.mubr.bf16.mxu0 0
        %2154 = vmatmul.mubr.bf16.gmra.mrb[0].mxu0 %v1516
        %v2155 = vpop.f32.mrb[0].mxu0
        %v2156 = vadd.f32 %v1995, %v2155
        %v2157 = vpop.f32.mrb[0].mxu0
        %v2158 = vpop.f32.mrb[0].mxu0
        %v2159 = vadd.f32 %v1998, %v2158
        %v2160 = vpop.f32.mrb[0].mxu0
        %2161 = vdwg.mxu0
        %v2162 = vmax.f32 %v2036, 0.0
        %v2163 = vmax.f32 %v2039, 0.0
        %v2164 = vmax.f32 %v2044, 0.0
        %v2165 = vmax.f32 %v2047, 0.0
        %v2166 = vmax.f32 %v2052, 0.0
        %v2167 = vmax.f32 %v2055, 0.0
        %v2168 = vmax.f32 %v2060, 0.0
        %v2169 = vmax.f32 %v2063, 0.0
        %v2170 = vmax.f32 %v2068, 0.0
        %v2171 = vmax.f32 %v2071, 0.0
        %v2172 = vmax.f32 %v2076, 0.0
        %v2173 = vmax.f32 %v2079, 0.0
        %v2174 = vmax.f32 %v2084, 0.0
        %v2175 = vmax.f32 %v2087, 0.0
        %v2176 = vmax.f32 %v2092, 0.0
        %v2177 = vmax.f32 %v2095, 0.0
        %v2178 = vmax.f32 %v2100, 0.0
        %v2179 = vmax.f32 %v2103, 0.0
        %v2180 = vmax.f32 %v2108, 0.0
        %v2181 = vmax.f32 %v2111, 0.0
        %v2182 = vmax.f32 %v2116, 0.0
        %v2183 = vmax.f32 %v2119, 0.0
        %v2184 = vmax.f32 %v2124, 0.0
        %v2185 = vmax.f32 %v2127, 0.0
        %v2186 = vmax.f32 %v2132, 0.0
        %v2187 = vmax.f32 %v2135, 0.0
        %v2188 = vmax.f32 %v2140, 0.0
        %v2189 = vmax.f32 %v2143, 0.0
        %v2190 = vmax.f32 %v2148, 0.0
        %v2191 = vmax.f32 %v2151, 0.0
        %v2192 = vmax.f32 %v2156, 0.0
        %v2193 = vmax.f32 %v2159, 0.0
        %v2194 = vld [vmem:[#allocation8] sm:$0xff]
        %v2195 = vld [vmem:[#allocation8 + $0x8] sm:$0xff]
        %v2196 = vld [vmem:[#allocation8 + $0x10] sm:$0xff]
        %v2197 = vld [vmem:[#allocation8 + $0x18] sm:$0xff]
        %v2198 = vld [vmem:[#allocation8 + $0x20] sm:$0xff]
        %v2199 = vld [vmem:[#allocation8 + $0x28] sm:$0xff]
        %v2200 = vld [vmem:[#allocation8 + $0x30] sm:$0xff]
        %v2201 = vld [vmem:[#allocation8 + $0x38] sm:$0xff]
        %v2202 = vld [vmem:[#allocation8 + $0x40] sm:$0xff]
        %v2203 = vld [vmem:[#allocation8 + $0x48] sm:$0xff]
        %v2204 = vld [vmem:[#allocation8 + $0x50] sm:$0xff]
        %v2205 = vld [vmem:[#allocation8 + $0x58] sm:$0xff]
        %v2206 = vld [vmem:[#allocation8 + $0x60] sm:$0xff]
        %v2207 = vld [vmem:[#allocation8 + $0x68] sm:$0xff]
        %v2208 = vld [vmem:[#allocation8 + $0x70] sm:$0xff]
        %v2209 = vld [vmem:[#allocation8 + $0x78] sm:$0xff]
        %v2210 = vld [vmem:[#allocation10] sm:$0x1]
        %v2212 = vlaneseq
        %v2213 = vshrl.u32 %v2212, 7
        %v2214 = vsub.s32 0, %v2213
        %v2215 = vrot.slane %v2210, %v2214
        %2217 = vmatprep.subr.mxu0 0.0
        %2218 = vmatpush1.msra.mxu0 %v2194
        %2219 = vmatprep.subr.mxu0 0.0
        %2220 = vmatpush1.msra.mxu0 %v2195
        %2221 = vmatprep.subr.mxu0 0.0
        %2222 = vmatpush1.msra.mxu0 %v2196
        %2223 = vmatprep.subr.mxu0 0.0
        %2224 = vmatpush1.msra.mxu0 %v2197
        %2225 = vmatprep.subr.mxu0 0.0
        %2226 = vmatpush1.msra.mxu0 %v2198
        %2227 = vmatprep.subr.mxu0 0.0
        %2228 = vmatpush1.msra.mxu0 %v2199
        %2229 = vmatprep.subr.mxu0 0.0
        %2230 = vmatpush1.msra.mxu0 %v2200
        %2231 = vmatprep.subr.mxu0 0.0
        %2232 = vmatpush1.msra.mxu0 %v2201
        %2233 = vmatprep.subr.mxu0 0.0
        %2234 = vmatpush1.msra.mxu0 %v2202
        %2235 = vmatprep.subr.mxu0 0.0
        %2236 = vmatpush1.msra.mxu0 %v2203
        %2237 = vmatprep.subr.mxu0 0.0
        %2238 = vmatpush1.msra.mxu0 %v2204
        %2239 = vmatprep.subr.mxu0 0.0
        %2240 = vmatpush1.msra.mxu0 %v2205
        %2241 = vmatprep.subr.mxu0 0.0
        %2242 = vmatpush1.msra.mxu0 %v2206
        %2243 = vmatprep.subr.mxu0 0.0
        %2244 = vmatpush1.msra.mxu0 %v2207
        %2245 = vmatprep.subr.mxu0 0.0
        %2246 = vmatpush1.msra.mxu0 %v2208
        %2247 = vmatprep.subr.mxu0 0.0
        %2248 = vmatpush1.msra.mxu0 %v2209
        %2249 = vmatprep.subr.mxu0 0.0
        %2250 = vmatpush1.msra.mxu0 0.0
        %2251 = vmatprep.subr.mxu0 0.0
        %2252 = vmatpush1.msra.mxu0 0.0
        %2253 = vmatprep.subr.mxu0 0.0
        %2254 = vmatpush1.msra.mxu0 0.0
        %2255 = vmatprep.subr.mxu0 0.0
        %2256 = vmatpush1.msra.mxu0 0.0
        %2257 = vmatprep.subr.mxu0 0.0
        %2258 = vmatpush1.msra.mxu0 0.0
        %2259 = vmatprep.subr.mxu0 0.0
        %2260 = vmatpush1.msra.mxu0 0.0
        %2261 = vmatprep.subr.mxu0 0.0
        %2262 = vmatpush1.msra.mxu0 0.0
        %2263 = vmatprep.subr.mxu0 0.0
        %2264 = vmatpush1.msra.mxu0 0.0
        %2265 = vmatprep.subr.mxu0 0.0
        %2266 = vmatpush1.msra.mxu0 0.0
        %2267 = vmatprep.subr.mxu0 0.0
        %2268 = vmatpush1.msra.mxu0 0.0
        %2269 = vmatprep.subr.mxu0 0.0
        %2270 = vmatpush1.msra.mxu0 0.0
        %2271 = vmatprep.subr.mxu0 0.0
        %2272 = vmatpush1.msra.mxu0 0.0
        %2273 = vmatprep.subr.mxu0 0.0
        %2274 = vmatpush1.msra.mxu0 0.0
        %2275 = vmatprep.subr.mxu0 0.0
        %2276 = vmatpush1.msra.mxu0 0.0
        %2277 = vmatprep.subr.mxu0 0.0
        %2278 = vmatpush1.msra.mxu0 0.0
        %2279 = vmatprep.subr.mxu0 0.0
        %2280 = vmatpush1.msra.mxu0 0.0
        %2281 = vmatprep.mubr.f32.mxu0 0.0
        %2282 = vmatmul.mubr.f32.gmra.mrb[0].mxu0 %v2162
        %v2283 = vpop.f32.mrb[0].mxu0
        %v2284 = vadd.f32 %v2215, %v2283
        %v2285 = vpop.f32.mrb[0].mxu0
        %2286 = vmatprep.mubr.f32.mxu0 0.0
        %2287 = vmatmul.mubr.f32.gmra.mrb[0].mxu0 %v2163
        %v2288 = vpop.f32.mrb[0].mxu0
        %v2289 = vadd.f32 %v2215, %v2288
        %v2290 = vpop.f32.mrb[0].mxu0
        %2291 = vmatprep.mubr.f32.mxu0 0.0
        %2292 = vmatmul.mubr.f32.gmra.mrb[0].mxu0 %v2164
        %v2293 = vpop.f32.mrb[0].mxu0
        %v2294 = vadd.f32 %v2215, %v2293
        %v2295 = vpop.f32.mrb[0].mxu0
        %2296 = vmatprep.mubr.f32.mxu0 0.0
        %2297 = vmatmul.mubr.f32.gmra.mrb[0].mxu0 %v2165
        %v2298 = vpop.f32.mrb[0].mxu0
        %v2299 = vadd.f32 %v2215, %v2298
        %v2300 = vpop.f32.mrb[0].mxu0
        %2301 = vmatprep.mubr.f32.mxu0 0.0
        %2302 = vmatmul.mubr.f32.gmra.mrb[0].mxu0 %v2166
        %v2303 = vpop.f32.mrb[0].mxu0
        %v2304 = vadd.f32 %v2215, %v2303
        %v2305 = vpop.f32.mrb[0].mxu0
        %2306 = vmatprep.mubr.f32.mxu0 0.0
        %2307 = vmatmul.mubr.f32.gmra.mrb[0].mxu0 %v2167
        %v2308 = vpop.f32.mrb[0].mxu0
        %v2309 = vadd.f32 %v2215, %v2308
        %v2310 = vpop.f32.mrb[0].mxu0
        %2311 = vmatprep.mubr.f32.mxu0 0.0
        %2312 = vmatmul.mubr.f32.gmra.mrb[0].mxu0 %v2168
        %v2313 = vpop.f32.mrb[0].mxu0
        %v2314 = vadd.f32 %v2215, %v2313
        %v2315 = vpop.f32.mrb[0].mxu0
        %2316 = vmatprep.mubr.f32.mxu0 0.0
        %2317 = vmatmul.mubr.f32.gmra.mrb[0].mxu0 %v2169
        %v2318 = vpop.f32.mrb[0].mxu0
        %v2319 = vadd.f32 %v2215, %v2318
        %v2320 = vpop.f32.mrb[0].mxu0
        %2321 = vmatprep.mubr.f32.mxu0 0.0
        %2322 = vmatmul.mubr.f32.gmra.mrb[0].mxu0 %v2170
        %v2323 = vpop.f32.mrb[0].mxu0
        %v2324 = vadd.f32 %v2215, %v2323
        %v2325 = vpop.f32.mrb[0].mxu0
        %2326 = vmatprep.mubr.f32.mxu0 0.0
        %2327 = vmatmul.mubr.f32.gmra.mrb[0].mxu0 %v2171
        %v2328 = vpop.f32.mrb[0].mxu0
        %v2329 = vadd.f32 %v2215, %v2328
        %v2330 = vpop.f32.mrb[0].mxu0
        %2331 = vmatprep.mubr.f32.mxu0 0.0
        %2332 = vmatmul.mubr.f32.gmra.mrb[0].mxu0 %v2172
        %v2333 = vpop.f32.mrb[0].mxu0
        %v2334 = vadd.f32 %v2215, %v2333
        %v2335 = vpop.f32.mrb[0].mxu0
        %2336 = vmatprep.mubr.f32.mxu0 0.0
        %2337 = vmatmul.mubr.f32.gmra.mrb[0].mxu0 %v2173
        %v2338 = vpop.f32.mrb[0].mxu0
        %v2339 = vadd.f32 %v2215, %v2338
        %v2340 = vpop.f32.mrb[0].mxu0
        %2341 = vmatprep.mubr.f32.mxu0 0.0
        %2342 = vmatmul.mubr.f32.gmra.mrb[0].mxu0 %v2174
        %v2343 = vpop.f32.mrb[0].mxu0
        %v2344 = vadd.f32 %v2215, %v2343
        %v2345 = vpop.f32.mrb[0].mxu0
        %2346 = vmatprep.mubr.f32.mxu0 0.0
        %2347 = vmatmul.mubr.f32.gmra.mrb[0].mxu0 %v2175
        %v2348 = vpop.f32.mrb[0].mxu0
        %v2349 = vadd.f32 %v2215, %v2348
        %v2350 = vpop.f32.mrb[0].mxu0
        %2351 = vmatprep.mubr.f32.mxu0 0.0
        %2352 = vmatmul.mubr.f32.gmra.mrb[0].mxu0 %v2176
        %v2353 = vpop.f32.mrb[0].mxu0
        %v2354 = vadd.f32 %v2215, %v2353
        %v2355 = vpop.f32.mrb[0].mxu0
        %2356 = vmatprep.mubr.f32.mxu0 0.0
        %2357 = vmatmul.mubr.f32.gmra.mrb[0].mxu0 %v2177
        %v2358 = vpop.f32.mrb[0].mxu0
        %v2359 = vadd.f32 %v2215, %v2358
        %v2360 = vpop.f32.mrb[0].mxu0
        %2361 = vmatprep.mubr.f32.mxu0 0.0
        %2362 = vmatmul.mubr.f32.gmra.mrb[0].mxu0 %v2178
        %v2363 = vpop.f32.mrb[0].mxu0
        %v2364 = vadd.f32 %v2215, %v2363
        %v2365 = vpop.f32.mrb[0].mxu0
        %2366 = vmatprep.mubr.f32.mxu0 0.0
        %2367 = vmatmul.mubr.f32.gmra.mrb[0].mxu0 %v2179
        %v2368 = vpop.f32.mrb[0].mxu0
        %v2369 = vadd.f32 %v2215, %v2368
        %v2370 = vpop.f32.mrb[0].mxu0
        %2371 = vmatprep.mubr.f32.mxu0 0.0
        %2372 = vmatmul.mubr.f32.gmra.mrb[0].mxu0 %v2180
        %v2373 = vpop.f32.mrb[0].mxu0
        %v2374 = vadd.f32 %v2215, %v2373
        %v2375 = vpop.f32.mrb[0].mxu0
        %2376 = vmatprep.mubr.f32.mxu0 0.0
        %2377 = vmatmul.mubr.f32.gmra.mrb[0].mxu0 %v2181
        %v2378 = vpop.f32.mrb[0].mxu0
        %v2379 = vadd.f32 %v2215, %v2378
        %v2380 = vpop.f32.mrb[0].mxu0
        %2381 = vmatprep.mubr.f32.mxu0 0.0
        %2382 = vmatmul.mubr.f32.gmra.mrb[0].mxu0 %v2182
        %v2383 = vpop.f32.mrb[0].mxu0
        %v2384 = vadd.f32 %v2215, %v2383
        %v2385 = vpop.f32.mrb[0].mxu0
        %2386 = vmatprep.mubr.f32.mxu0 0.0
        %2387 = vmatmul.mubr.f32.gmra.mrb[0].mxu0 %v2183
        %v2388 = vpop.f32.mrb[0].mxu0
        %v2389 = vadd.f32 %v2215, %v2388
        %v2390 = vpop.f32.mrb[0].mxu0
        %2391 = vmatprep.mubr.f32.mxu0 0.0
        %2392 = vmatmul.mubr.f32.gmra.mrb[0].mxu0 %v2184
        %v2393 = vpop.f32.mrb[0].mxu0
        %v2394 = vadd.f32 %v2215, %v2393
        %v2395 = vpop.f32.mrb[0].mxu0
        %2396 = vmatprep.mubr.f32.mxu0 0.0
        %2397 = vmatmul.mubr.f32.gmra.mrb[0].mxu0 %v2185
        %v2398 = vpop.f32.mrb[0].mxu0
        %v2399 = vadd.f32 %v2215, %v2398
        %v2400 = vpop.f32.mrb[0].mxu0
        %2401 = vmatprep.mubr.f32.mxu0 0.0
        %2402 = vmatmul.mubr.f32.gmra.mrb[0].mxu0 %v2186
        %v2403 = vpop.f32.mrb[0].mxu0
        %v2404 = vadd.f32 %v2215, %v2403
        %v2405 = vpop.f32.mrb[0].mxu0
        %2406 = vmatprep.mubr.f32.mxu0 0.0
        %2407 = vmatmul.mubr.f32.gmra.mrb[0].mxu0 %v2187
        %v2408 = vpop.f32.mrb[0].mxu0
        %v2409 = vadd.f32 %v2215, %v2408
        %v2410 = vpop.f32.mrb[0].mxu0
        %2411 = vmatprep.mubr.f32.mxu0 0.0
        %2412 = vmatmul.mubr.f32.gmra.mrb[0].mxu0 %v2188
        %v2413 = vpop.f32.mrb[0].mxu0
        %v2414 = vadd.f32 %v2215, %v2413
        %v2415 = vpop.f32.mrb[0].mxu0
        %2416 = vmatprep.mubr.f32.mxu0 0.0
        %2417 = vmatmul.mubr.f32.gmra.mrb[0].mxu0 %v2189
        %v2418 = vpop.f32.mrb[0].mxu0
        %v2419 = vadd.f32 %v2215, %v2418
        %v2420 = vpop.f32.mrb[0].mxu0
        %2421 = vmatprep.mubr.f32.mxu0 0.0
        %2422 = vmatmul.mubr.f32.gmra.mrb[0].mxu0 %v2190
        %v2423 = vpop.f32.mrb[0].mxu0
        %v2424 = vadd.f32 %v2215, %v2423
        %v2425 = vpop.f32.mrb[0].mxu0
        %2426 = vmatprep.mubr.f32.mxu0 0.0
        %2427 = vmatmul.mubr.f32.gmra.mrb[0].mxu0 %v2191
        %v2428 = vpop.f32.mrb[0].mxu0
        %v2429 = vadd.f32 %v2215, %v2428
        %v2430 = vpop.f32.mrb[0].mxu0
        %2431 = vmatprep.mubr.f32.mxu0 0.0
        %2432 = vmatmul.mubr.f32.gmra.mrb[0].mxu0 %v2192
        %v2433 = vpop.f32.mrb[0].mxu0
        %v2434 = vadd.f32 %v2215, %v2433
        %v2435 = vpop.f32.mrb[0].mxu0
        %2436 = vmatprep.mubr.f32.mxu0 0.0
        %2437 = vmatmul.mubr.f32.gmra.mrb[0].mxu0 %v2193
        %v2438 = vpop.f32.mrb[0].mxu0
        %v2439 = vadd.f32 %v2215, %v2438
        %v2440 = vpop.f32.mrb[0].mxu0
        %2441 = vdwg.mxu0
        %v2442 = vmax.f32 %v2284, 0.0
        %v2443 = vmax.f32 %v2289, 0.0
        %v2444 = vmax.f32 %v2294, 0.0
        %v2445 = vmax.f32 %v2299, 0.0
        %v2446 = vmax.f32 %v2304, 0.0
        %v2447 = vmax.f32 %v2309, 0.0
        %v2448 = vmax.f32 %v2314, 0.0
        %v2449 = vmax.f32 %v2319, 0.0
        %v2450 = vmax.f32 %v2324, 0.0
        %v2451 = vmax.f32 %v2329, 0.0
        %v2452 = vmax.f32 %v2334, 0.0
        %v2453 = vmax.f32 %v2339, 0.0
        %v2454 = vmax.f32 %v2344, 0.0
        %v2455 = vmax.f32 %v2349, 0.0
        %v2456 = vmax.f32 %v2354, 0.0
        %v2457 = vmax.f32 %v2359, 0.0
        %v2458 = vmax.f32 %v2364, 0.0
        %v2459 = vmax.f32 %v2369, 0.0
        %v2460 = vmax.f32 %v2374, 0.0
        %v2461 = vmax.f32 %v2379, 0.0
        %v2462 = vmax.f32 %v2384, 0.0
        %v2463 = vmax.f32 %v2389, 0.0
        %v2464 = vmax.f32 %v2394, 0.0
        %v2465 = vmax.f32 %v2399, 0.0
        %v2466 = vmax.f32 %v2404, 0.0
        %v2467 = vmax.f32 %v2409, 0.0
        %v2468 = vmax.f32 %v2414, 0.0
        %v2469 = vmax.f32 %v2419, 0.0
        %v2470 = vmax.f32 %v2424, 0.0
        %v2471 = vmax.f32 %v2429, 0.0
        %v2472 = vmax.f32 %v2434, 0.0
        %v2473 = vmax.f32 %v2439, 0.0
        %v2474 = vld [vmem:[#allocation11] sm:$0xff]
        %v2475 = vld [vmem:[#allocation11 + $0x8] sm:$0xff]
        %v2476 = vld [vmem:[#allocation11 + $0x10] sm:$0xff]
        %v2477 = vld [vmem:[#allocation11 + $0x18] sm:$0xff]
        %v2478 = vld [vmem:[#allocation11 + $0x20] sm:$0xff]
        %v2479 = vld [vmem:[#allocation11 + $0x28] sm:$0xff]
        %v2480 = vld [vmem:[#allocation11 + $0x30] sm:$0xff]
        %v2481 = vld [vmem:[#allocation11 + $0x38] sm:$0xff]
        %v2482 = vld [vmem:[#allocation11 + $0x40] sm:$0xff]
        %v2483 = vld [vmem:[#allocation11 + $0x48] sm:$0xff]
        %v2484 = vld [vmem:[#allocation11 + $0x50] sm:$0xff]
        %v2485 = vld [vmem:[#allocation11 + $0x58] sm:$0xff]
        %v2486 = vld [vmem:[#allocation11 + $0x60] sm:$0xff]
        %v2487 = vld [vmem:[#allocation11 + $0x68] sm:$0xff]
        %v2488 = vld [vmem:[#allocation11 + $0x70] sm:$0xff]
        %v2489 = vld [vmem:[#allocation11 + $0x78] sm:$0xff]
        %v2490 = vld [vmem:[#allocation13] sm:$0x1]
        %v2492 = vlaneseq
        %v2493 = vshrl.u32 %v2492, 7
        %v2494 = vsub.s32 0, %v2493
        %v2495 = vrot.slane %v2490, %v2494
        %2497 = vmatprep.subr.mxu0 0.0
        %2498 = vmatpush1.msra.mxu0 %v2474
        %2499 = vmatprep.subr.mxu0 0.0
        %2500 = vmatpush1.msra.mxu0 %v2475
        %2501 = vmatprep.subr.mxu0 0.0
        %2502 = vmatpush1.msra.mxu0 %v2476
        %2503 = vmatprep.subr.mxu0 0.0
        %2504 = vmatpush1.msra.mxu0 %v2477
        %2505 = vmatprep.subr.mxu0 0.0
        %2506 = vmatpush1.msra.mxu0 %v2478
        %2507 = vmatprep.subr.mxu0 0.0
        %2508 = vmatpush1.msra.mxu0 %v2479
        %2509 = vmatprep.subr.mxu0 0.0
        %2510 = vmatpush1.msra.mxu0 %v2480
        %2511 = vmatprep.subr.mxu0 0.0
        %2512 = vmatpush1.msra.mxu0 %v2481
        %2513 = vmatprep.subr.mxu0 0.0
        %2514 = vmatpush1.msra.mxu0 %v2482
        %2515 = vmatprep.subr.mxu0 0.0
        %2516 = vmatpush1.msra.mxu0 %v2483
        %2517 = vmatprep.subr.mxu0 0.0
        %2518 = vmatpush1.msra.mxu0 %v2484
        %2519 = vmatprep.subr.mxu0 0.0
        %2520 = vmatpush1.msra.mxu0 %v2485
        %2521 = vmatprep.subr.mxu0 0.0
        %2522 = vmatpush1.msra.mxu0 %v2486
        %2523 = vmatprep.subr.mxu0 0.0
        %2524 = vmatpush1.msra.mxu0 %v2487
        %2525 = vmatprep.subr.mxu0 0.0
        %2526 = vmatpush1.msra.mxu0 %v2488
        %2527 = vmatprep.subr.mxu0 0.0
        %2528 = vmatpush1.msra.mxu0 %v2489
        %2529 = vmatprep.subr.mxu0 0.0
        %2530 = vmatpush1.msra.mxu0 0.0
        %2531 = vmatprep.subr.mxu0 0.0
        %2532 = vmatpush1.msra.mxu0 0.0
        %2533 = vmatprep.subr.mxu0 0.0
        %2534 = vmatpush1.msra.mxu0 0.0
        %2535 = vmatprep.subr.mxu0 0.0
        %2536 = vmatpush1.msra.mxu0 0.0
        %2537 = vmatprep.subr.mxu0 0.0
        %2538 = vmatpush1.msra.mxu0 0.0
        %2539 = vmatprep.subr.mxu0 0.0
        %2540 = vmatpush1.msra.mxu0 0.0
        %2541 = vmatprep.subr.mxu0 0.0
        %2542 = vmatpush1.msra.mxu0 0.0
        %2543 = vmatprep.subr.mxu0 0.0
        %2544 = vmatpush1.msra.mxu0 0.0
        %2545 = vmatprep.subr.mxu0 0.0
        %2546 = vmatpush1.msra.mxu0 0.0
        %2547 = vmatprep.subr.mxu0 0.0
        %2548 = vmatpush1.msra.mxu0 0.0
        %2549 = vmatprep.subr.mxu0 0.0
        %2550 = vmatpush1.msra.mxu0 0.0
        %2551 = vmatprep.subr.mxu0 0.0
        %2552 = vmatpush1.msra.mxu0 0.0
        %2553 = vmatprep.subr.mxu0 0.0
        %2554 = vmatpush1.msra.mxu0 0.0
        %2555 = vmatprep.subr.mxu0 0.0
        %2556 = vmatpush1.msra.mxu0 0.0
        %2557 = vmatprep.subr.mxu0 0.0
        %2558 = vmatpush1.msra.mxu0 0.0
        %2559 = vmatprep.subr.mxu0 0.0
        %2560 = vmatpush1.msra.mxu0 0.0
        %2561 = vmatprep.mubr.f32.mxu0 0.0
        %2562 = vmatmul.mubr.f32.gmra.mrb[0].mxu0 %v2442
        %v2563 = vpop.f32.mrb[0].mxu0
        %v2564 = vadd.f32 %v2495, %v2563
        %v2565 = vpop.f32.mrb[0].mxu0
        %2566 = vmatprep.mubr.f32.mxu0 0.0
        %2567 = vmatmul.mubr.f32.gmra.mrb[0].mxu0 %v2443
        %v2568 = vpop.f32.mrb[0].mxu0
        %v2569 = vadd.f32 %v2495, %v2568
        %v2570 = vpop.f32.mrb[0].mxu0
        %2571 = vmatprep.mubr.f32.mxu0 0.0
        %2572 = vmatmul.mubr.f32.gmra.mrb[0].mxu0 %v2444
        %v2573 = vpop.f32.mrb[0].mxu0
        %v2574 = vadd.f32 %v2495, %v2573
        %v2575 = vpop.f32.mrb[0].mxu0
        %2576 = vmatprep.mubr.f32.mxu0 0.0
        %2577 = vmatmul.mubr.f32.gmra.mrb[0].mxu0 %v2445
        %v2578 = vpop.f32.mrb[0].mxu0
        %v2579 = vadd.f32 %v2495, %v2578
        %v2580 = vpop.f32.mrb[0].mxu0
        %2581 = vmatprep.mubr.f32.mxu0 0.0
        %2582 = vmatmul.mubr.f32.gmra.mrb[0].mxu0 %v2446
        %v2583 = vpop.f32.mrb[0].mxu0
        %v2584 = vadd.f32 %v2495, %v2583
        %v2585 = vpop.f32.mrb[0].mxu0
        %2586 = vmatprep.mubr.f32.mxu0 0.0
        %2587 = vmatmul.mubr.f32.gmra.mrb[0].mxu0 %v2447
        %v2588 = vpop.f32.mrb[0].mxu0
        %v2589 = vadd.f32 %v2495, %v2588
        %v2590 = vpop.f32.mrb[0].mxu0
        %2591 = vmatprep.mubr.f32.mxu0 0.0
        %2592 = vmatmul.mubr.f32.gmra.mrb[0].mxu0 %v2448
        %v2593 = vpop.f32.mrb[0].mxu0
        %v2594 = vadd.f32 %v2495, %v2593
        %v2595 = vpop.f32.mrb[0].mxu0
        %2596 = vmatprep.mubr.f32.mxu0 0.0
        %2597 = vmatmul.mubr.f32.gmra.mrb[0].mxu0 %v2449
        %v2598 = vpop.f32.mrb[0].mxu0
        %v2599 = vadd.f32 %v2495, %v2598
        %v2600 = vpop.f32.mrb[0].mxu0
        %2601 = vmatprep.mubr.f32.mxu0 0.0
        %2602 = vmatmul.mubr.f32.gmra.mrb[0].mxu0 %v2450
        %v2603 = vpop.f32.mrb[0].mxu0
        %v2604 = vadd.f32 %v2495, %v2603
        %v2605 = vpop.f32.mrb[0].mxu0
        %2606 = vmatprep.mubr.f32.mxu0 0.0
        %2607 = vmatmul.mubr.f32.gmra.mrb[0].mxu0 %v2451
        %v2608 = vpop.f32.mrb[0].mxu0
        %v2609 = vadd.f32 %v2495, %v2608
        %v2610 = vpop.f32.mrb[0].mxu0
        %2611 = vmatprep.mubr.f32.mxu0 0.0
        %2612 = vmatmul.mubr.f32.gmra.mrb[0].mxu0 %v2452
        %v2613 = vpop.f32.mrb[0].mxu0
        %v2614 = vadd.f32 %v2495, %v2613
        %v2615 = vpop.f32.mrb[0].mxu0
        %2616 = vmatprep.mubr.f32.mxu0 0.0
        %2617 = vmatmul.mubr.f32.gmra.mrb[0].mxu0 %v2453
        %v2618 = vpop.f32.mrb[0].mxu0
        %v2619 = vadd.f32 %v2495, %v2618
        %v2620 = vpop.f32.mrb[0].mxu0
        %2621 = vmatprep.mubr.f32.mxu0 0.0
        %2622 = vmatmul.mubr.f32.gmra.mrb[0].mxu0 %v2454
        %v2623 = vpop.f32.mrb[0].mxu0
        %v2624 = vadd.f32 %v2495, %v2623
        %v2625 = vpop.f32.mrb[0].mxu0
        %2626 = vmatprep.mubr.f32.mxu0 0.0
        %2627 = vmatmul.mubr.f32.gmra.mrb[0].mxu0 %v2455
        %v2628 = vpop.f32.mrb[0].mxu0
        %v2629 = vadd.f32 %v2495, %v2628
        %v2630 = vpop.f32.mrb[0].mxu0
        %2631 = vmatprep.mubr.f32.mxu0 0.0
        %2632 = vmatmul.mubr.f32.gmra.mrb[0].mxu0 %v2456
        %v2633 = vpop.f32.mrb[0].mxu0
        %v2634 = vadd.f32 %v2495, %v2633
        %v2635 = vpop.f32.mrb[0].mxu0
        %2636 = vmatprep.mubr.f32.mxu0 0.0
        %2637 = vmatmul.mubr.f32.gmra.mrb[0].mxu0 %v2457
        %v2638 = vpop.f32.mrb[0].mxu0
        %v2639 = vadd.f32 %v2495, %v2638
        %v2640 = vpop.f32.mrb[0].mxu0
        %2641 = vmatprep.mubr.f32.mxu0 0.0
        %2642 = vmatmul.mubr.f32.gmra.mrb[0].mxu0 %v2458
        %v2643 = vpop.f32.mrb[0].mxu0
        %v2644 = vadd.f32 %v2495, %v2643
        %v2645 = vpop.f32.mrb[0].mxu0
        %2646 = vmatprep.mubr.f32.mxu0 0.0
        %2647 = vmatmul.mubr.f32.gmra.mrb[0].mxu0 %v2459
        %v2648 = vpop.f32.mrb[0].mxu0
        %v2649 = vadd.f32 %v2495, %v2648
        %v2650 = vpop.f32.mrb[0].mxu0
        %2651 = vmatprep.mubr.f32.mxu0 0.0
        %2652 = vmatmul.mubr.f32.gmra.mrb[0].mxu0 %v2460
        %v2653 = vpop.f32.mrb[0].mxu0
        %v2654 = vadd.f32 %v2495, %v2653
        %v2655 = vpop.f32.mrb[0].mxu0
        %2656 = vmatprep.mubr.f32.mxu0 0.0
        %2657 = vmatmul.mubr.f32.gmra.mrb[0].mxu0 %v2461
        %v2658 = vpop.f32.mrb[0].mxu0
        %v2659 = vadd.f32 %v2495, %v2658
        %v2660 = vpop.f32.mrb[0].mxu0
        %2661 = vmatprep.mubr.f32.mxu0 0.0
        %2662 = vmatmul.mubr.f32.gmra.mrb[0].mxu0 %v2462
        %v2663 = vpop.f32.mrb[0].mxu0
        %v2664 = vadd.f32 %v2495, %v2663
        %v2665 = vpop.f32.mrb[0].mxu0
        %2666 = vmatprep.mubr.f32.mxu0 0.0
        %2667 = vmatmul.mubr.f32.gmra.mrb[0].mxu0 %v2463
        %v2668 = vpop.f32.mrb[0].mxu0
        %v2669 = vadd.f32 %v2495, %v2668
        %v2670 = vpop.f32.mrb[0].mxu0
        %2671 = vmatprep.mubr.f32.mxu0 0.0
        %2672 = vmatmul.mubr.f32.gmra.mrb[0].mxu0 %v2464
        %v2673 = vpop.f32.mrb[0].mxu0
        %v2674 = vadd.f32 %v2495, %v2673
        %v2675 = vpop.f32.mrb[0].mxu0
        %2676 = vmatprep.mubr.f32.mxu0 0.0
        %2677 = vmatmul.mubr.f32.gmra.mrb[0].mxu0 %v2465
        %v2678 = vpop.f32.mrb[0].mxu0
        %v2679 = vadd.f32 %v2495, %v2678
        %v2680 = vpop.f32.mrb[0].mxu0
        %2681 = vmatprep.mubr.f32.mxu0 0.0
        %2682 = vmatmul.mubr.f32.gmra.mrb[0].mxu0 %v2466
        %v2683 = vpop.f32.mrb[0].mxu0
        %v2684 = vadd.f32 %v2495, %v2683
        %v2685 = vpop.f32.mrb[0].mxu0
        %2686 = vmatprep.mubr.f32.mxu0 0.0
        %2687 = vmatmul.mubr.f32.gmra.mrb[0].mxu0 %v2467
        %v2688 = vpop.f32.mrb[0].mxu0
        %v2689 = vadd.f32 %v2495, %v2688
        %v2690 = vpop.f32.mrb[0].mxu0
        %2691 = vmatprep.mubr.f32.mxu0 0.0
        %2692 = vmatmul.mubr.f32.gmra.mrb[0].mxu0 %v2468
        %v2693 = vpop.f32.mrb[0].mxu0
        %v2694 = vadd.f32 %v2495, %v2693
        %v2695 = vpop.f32.mrb[0].mxu0
        %2696 = vmatprep.mubr.f32.mxu0 0.0
        %2697 = vmatmul.mubr.f32.gmra.mrb[0].mxu0 %v2469
        %v2698 = vpop.f32.mrb[0].mxu0
        %v2699 = vadd.f32 %v2495, %v2698
        %v2700 = vpop.f32.mrb[0].mxu0
        %2701 = vmatprep.mubr.f32.mxu0 0.0
        %2702 = vmatmul.mubr.f32.gmra.mrb[0].mxu0 %v2470
        %v2703 = vpop.f32.mrb[0].mxu0
        %v2704 = vadd.f32 %v2495, %v2703
        %v2705 = vpop.f32.mrb[0].mxu0
        %2706 = vmatprep.mubr.f32.mxu0 0.0
        %2707 = vmatmul.mubr.f32.gmra.mrb[0].mxu0 %v2471
        %v2708 = vpop.f32.mrb[0].mxu0
        %v2709 = vadd.f32 %v2495, %v2708
        %v2710 = vpop.f32.mrb[0].mxu0
        %2711 = vmatprep.mubr.f32.mxu0 0.0
        %2712 = vmatmul.mubr.f32.gmra.mrb[0].mxu0 %v2472
        %v2713 = vpop.f32.mrb[0].mxu0
        %v2714 = vadd.f32 %v2495, %v2713
        %v2715 = vpop.f32.mrb[0].mxu0
        %2716 = vmatprep.mubr.f32.mxu0 0.0
        %2717 = vmatmul.mubr.f32.gmra.mrb[0].mxu0 %v2473
        %v2718 = vpop.f32.mrb[0].mxu0
        %v2719 = vadd.f32 %v2495, %v2718
        %v2720 = vpop.f32.mrb[0].mxu0
        %2721 = vdwg.mxu0
        %2722 = vmax.xlane.f32.xlu0 %v2564
        %v2723 = vpop.xlane.xlu0 %2722
        %2724 = vmax.xlane.f32.xlu0 %v2569
        %v2725 = vpop.xlane.xlu0 %2724
        %2726 = vmax.xlane.f32.xlu0 %v2574
        %v2727 = vpop.xlane.xlu0 %2726
        %2728 = vmax.xlane.f32.xlu0 %v2579
        %v2729 = vpop.xlane.xlu0 %2728
        %2730 = vmax.xlane.f32.xlu0 %v2584
        %v2731 = vpop.xlane.xlu0 %2730
        %2732 = vmax.xlane.f32.xlu0 %v2589
        %v2733 = vpop.xlane.xlu0 %2732
        %2734 = vmax.xlane.f32.xlu0 %v2594
        %v2735 = vpop.xlane.xlu0 %2734
        %2736 = vmax.xlane.f32.xlu0 %v2599
        %v2737 = vpop.xlane.xlu0 %2736
        %2738 = vmax.xlane.f32.xlu0 %v2604
        %v2739 = vpop.xlane.xlu0 %2738
        %2740 = vmax.xlane.f32.xlu0 %v2609
        %v2741 = vpop.xlane.xlu0 %2740
        %2742 = vmax.xlane.f32.xlu0 %v2614
        %v2743 = vpop.xlane.xlu0 %2742
        %2744 = vmax.xlane.f32.xlu0 %v2619
        %v2745 = vpop.xlane.xlu0 %2744
        %2746 = vmax.xlane.f32.xlu0 %v2624
        %v2747 = vpop.xlane.xlu0 %2746
        %2748 = vmax.xlane.f32.xlu0 %v2629
        %v2749 = vpop.xlane.xlu0 %2748
        %2750 = vmax.xlane.f32.xlu0 %v2634
        %v2751 = vpop.xlane.xlu0 %2750
        %2752 = vmax.xlane.f32.xlu0 %v2639
        %v2753 = vpop.xlane.xlu0 %2752
        %2754 = vmax.xlane.f32.xlu0 %v2644
        %v2755 = vpop.xlane.xlu0 %2754
        %2756 = vmax.xlane.f32.xlu0 %v2649
        %v2757 = vpop.xlane.xlu0 %2756
        %2758 = vmax.xlane.f32.xlu0 %v2654
        %v2759 = vpop.xlane.xlu0 %2758
        %2760 = vmax.xlane.f32.xlu0 %v2659
        %v2761 = vpop.xlane.xlu0 %2760
        %2762 = vmax.xlane.f32.xlu0 %v2664
        %v2763 = vpop.xlane.xlu0 %2762
        %2764 = vmax.xlane.f32.xlu0 %v2669
        %v2765 = vpop.xlane.xlu0 %2764
        %2766 = vmax.xlane.f32.xlu0 %v2674
        %v2767 = vpop.xlane.xlu0 %2766
        %2768 = vmax.xlane.f32.xlu0 %v2679
        %v2769 = vpop.xlane.xlu0 %2768
        %2770 = vmax.xlane.f32.xlu0 %v2684
        %v2771 = vpop.xlane.xlu0 %2770
        %2772 = vmax.xlane.f32.xlu0 %v2689
        %v2773 = vpop.xlane.xlu0 %2772
        %2774 = vmax.xlane.f32.xlu0 %v2694
        %v2775 = vpop.xlane.xlu0 %2774
        %2776 = vmax.xlane.f32.xlu0 %v2699
        %v2777 = vpop.xlane.xlu0 %2776
        %2778 = vmax.xlane.f32.xlu0 %v2704
        %v2779 = vpop.xlane.xlu0 %2778
        %2780 = vmax.xlane.f32.xlu0 %v2709
        %v2781 = vpop.xlane.xlu0 %2780
        %2782 = vmax.xlane.f32.xlu0 %v2714
        %v2783 = vpop.xlane.xlu0 %2782
        %2784 = vmax.xlane.f32.xlu0 %v2719
        %v2785 = vpop.xlane.xlu0 %2784
        %v2786 = vsub.f32 %v2564, %v2723
        %v2787 = vsub.f32 %v2569, %v2725
        %v2788 = vsub.f32 %v2574, %v2727
        %v2789 = vsub.f32 %v2579, %v2729
        %v2790 = vsub.f32 %v2584, %v2731
        %v2791 = vsub.f32 %v2589, %v2733
        %v2792 = vsub.f32 %v2594, %v2735
        %v2793 = vsub.f32 %v2599, %v2737
        %v2794 = vsub.f32 %v2604, %v2739
        %v2795 = vsub.f32 %v2609, %v2741
        %v2796 = vsub.f32 %v2614, %v2743
        %v2797 = vsub.f32 %v2619, %v2745
        %v2798 = vsub.f32 %v2624, %v2747
        %v2799 = vsub.f32 %v2629, %v2749
        %v2800 = vsub.f32 %v2634, %v2751
        %v2801 = vsub.f32 %v2639, %v2753
        %v2802 = vsub.f32 %v2644, %v2755
        %v2803 = vsub.f32 %v2649, %v2757
        %v2804 = vsub.f32 %v2654, %v2759
        %v2805 = vsub.f32 %v2659, %v2761
        %v2806 = vsub.f32 %v2664, %v2763
        %v2807 = vsub.f32 %v2669, %v2765
        %v2808 = vsub.f32 %v2674, %v2767
        %v2809 = vsub.f32 %v2679, %v2769
        %v2810 = vsub.f32 %v2684, %v2771
        %v2811 = vsub.f32 %v2689, %v2773
        %v2812 = vsub.f32 %v2694, %v2775
        %v2813 = vsub.f32 %v2699, %v2777
        %v2814 = vsub.f32 %v2704, %v2779
        %v2815 = vsub.f32 %v2709, %v2781
        %v2816 = vsub.f32 %v2714, %v2783
        %v2817 = vsub.f32 %v2719, %v2785
        %v2818 = vmul.f32 %v2786, 1.442695
        %v2819 = vpow.pop %v2818
        %v2820 = vmul.f32 %v2787, 1.442695
        %v2821 = vpow.pop %v2820
        %v2822 = vmul.f32 %v2788, 1.442695
        %v2823 = vpow.pop %v2822
        %v2824 = vmul.f32 %v2789, 1.442695
        %v2825 = vpow.pop %v2824
        %v2826 = vmul.f32 %v2790, 1.442695
        %v2827 = vpow.pop %v2826
        %v2828 = vmul.f32 %v2791, 1.442695
        %v2829 = vpow.pop %v2828
        %v2830 = vmul.f32 %v2792, 1.442695
        %v2831 = vpow.pop %v2830
        %v2832 = vmul.f32 %v2793, 1.442695
        %v2833 = vpow.pop %v2832
        %v2834 = vmul.f32 %v2794, 1.442695
        %v2835 = vpow.pop %v2834
        %v2836 = vmul.f32 %v2795, 1.442695
        %v2837 = vpow.pop %v2836
        %v2838 = vmul.f32 %v2796, 1.442695
        %v2839 = vpow.pop %v2838
        %v2840 = vmul.f32 %v2797, 1.442695
        %v2841 = vpow.pop %v2840
        %v2842 = vmul.f32 %v2798, 1.442695
        %v2843 = vpow.pop %v2842
        %v2844 = vmul.f32 %v2799, 1.442695
        %v2845 = vpow.pop %v2844
        %v2846 = vmul.f32 %v2800, 1.442695
        %v2847 = vpow.pop %v2846
        %v2848 = vmul.f32 %v2801, 1.442695
        %v2849 = vpow.pop %v2848
        %v2850 = vmul.f32 %v2802, 1.442695
        %v2851 = vpow.pop %v2850
        %v2852 = vmul.f32 %v2803, 1.442695
        %v2853 = vpow.pop %v2852
        %v2854 = vmul.f32 %v2804, 1.442695
        %v2855 = vpow.pop %v2854
        %v2856 = vmul.f32 %v2805, 1.442695
        %v2857 = vpow.pop %v2856
        %v2858 = vmul.f32 %v2806, 1.442695
        %v2859 = vpow.pop %v2858
        %v2860 = vmul.f32 %v2807, 1.442695
        %v2861 = vpow.pop %v2860
        %v2862 = vmul.f32 %v2808, 1.442695
        %v2863 = vpow.pop %v2862
        %v2864 = vmul.f32 %v2809, 1.442695
        %v2865 = vpow.pop %v2864
        %v2866 = vmul.f32 %v2810, 1.442695
        %v2867 = vpow.pop %v2866
        %v2868 = vmul.f32 %v2811, 1.442695
        %v2869 = vpow.pop %v2868
        %v2870 = vmul.f32 %v2812, 1.442695
        %v2871 = vpow.pop %v2870
        %v2872 = vmul.f32 %v2813, 1.442695
        %v2873 = vpow.pop %v2872
        %v2874 = vmul.f32 %v2814, 1.442695
        %v2875 = vpow.pop %v2874
        %v2876 = vmul.f32 %v2815, 1.442695
        %v2877 = vpow.pop %v2876
        %v2878 = vmul.f32 %v2816, 1.442695
        %v2879 = vpow.pop %v2878
        %v2880 = vmul.f32 %v2817, 1.442695
        %v2881 = vpow.pop %v2880
        %2882 = vadd.xlane.f32.xlu0 %v2819
        %v2883 = vpop.xlane.xlu0 %2882
        %2884 = vadd.xlane.f32.xlu0 %v2821
        %v2885 = vpop.xlane.xlu0 %2884
        %2886 = vadd.xlane.f32.xlu0 %v2823
        %v2887 = vpop.xlane.xlu0 %2886
        %2888 = vadd.xlane.f32.xlu0 %v2825
        %v2889 = vpop.xlane.xlu0 %2888
        %2890 = vadd.xlane.f32.xlu0 %v2827
        %v2891 = vpop.xlane.xlu0 %2890
        %2892 = vadd.xlane.f32.xlu0 %v2829
        %v2893 = vpop.xlane.xlu0 %2892
        %2894 = vadd.xlane.f32.xlu0 %v2831
        %v2895 = vpop.xlane.xlu0 %2894
        %2896 = vadd.xlane.f32.xlu0 %v2833
        %v2897 = vpop.xlane.xlu0 %2896
        %2898 = vadd.xlane.f32.xlu0 %v2835
        %v2899 = vpop.xlane.xlu0 %2898
        %2900 = vadd.xlane.f32.xlu0 %v2837
        %v2901 = vpop.xlane.xlu0 %2900
        %2902 = vadd.xlane.f32.xlu0 %v2839
        %v2903 = vpop.xlane.xlu0 %2902
        %2904 = vadd.xlane.f32.xlu0 %v2841
        %v2905 = vpop.xlane.xlu0 %2904
        %2906 = vadd.xlane.f32.xlu0 %v2843
        %v2907 = vpop.xlane.xlu0 %2906
        %2908 = vadd.xlane.f32.xlu0 %v2845
        %v2909 = vpop.xlane.xlu0 %2908
        %2910 = vadd.xlane.f32.xlu0 %v2847
        %v2911 = vpop.xlane.xlu0 %2910
        %2912 = vadd.xlane.f32.xlu0 %v2849
        %v2913 = vpop.xlane.xlu0 %2912
        %2914 = vadd.xlane.f32.xlu0 %v2851
        %v2915 = vpop.xlane.xlu0 %2914
        %2916 = vadd.xlane.f32.xlu0 %v2853
        %v2917 = vpop.xlane.xlu0 %2916
        %2918 = vadd.xlane.f32.xlu0 %v2855
        %v2919 = vpop.xlane.xlu0 %2918
        %2920 = vadd.xlane.f32.xlu0 %v2857
        %v2921 = vpop.xlane.xlu0 %2920
        %2922 = vadd.xlane.f32.xlu0 %v2859
        %v2923 = vpop.xlane.xlu0 %2922
        %2924 = vadd.xlane.f32.xlu0 %v2861
        %v2925 = vpop.xlane.xlu0 %2924
        %2926 = vadd.xlane.f32.xlu0 %v2863
        %v2927 = vpop.xlane.xlu0 %2926
        %2928 = vadd.xlane.f32.xlu0 %v2865
        %v2929 = vpop.xlane.xlu0 %2928
        %2930 = vadd.xlane.f32.xlu0 %v2867
        %v2931 = vpop.xlane.xlu0 %2930
        %2932 = vadd.xlane.f32.xlu0 %v2869
        %v2933 = vpop.xlane.xlu0 %2932
        %2934 = vadd.xlane.f32.xlu0 %v2871
        %v2935 = vpop.xlane.xlu0 %2934
        %2936 = vadd.xlane.f32.xlu0 %v2873
        %v2937 = vpop.xlane.xlu0 %2936
        %2938 = vadd.xlane.f32.xlu0 %v2875
        %v2939 = vpop.xlane.xlu0 %2938
        %2940 = vadd.xlane.f32.xlu0 %v2877
        %v2941 = vpop.xlane.xlu0 %2940
        %2942 = vadd.xlane.f32.xlu0 %v2879
        %v2943 = vpop.xlane.xlu0 %2942
        %2944 = vadd.xlane.f32.xlu0 %v2881
        %v2945 = vpop.xlane.xlu0 %2944
        %v2946 = vlog2.pop %v2883
        %v2947 = vmul.f32 %v2946, 0.6931472
        %v2948 = vlog2.pop %v2885
        %v2949 = vmul.f32 %v2948, 0.6931472
        %v2950 = vlog2.pop %v2887
        %v2951 = vmul.f32 %v2950, 0.6931472
        %v2952 = vlog2.pop %v2889
        %v2953 = vmul.f32 %v2952, 0.6931472
        %v2954 = vlog2.pop %v2891
        %v2955 = vmul.f32 %v2954, 0.6931472
        %v2956 = vlog2.pop %v2893
        %v2957 = vmul.f32 %v2956, 0.6931472
        %v2958 = vlog2.pop %v2895
        %v2959 = vmul.f32 %v2958, 0.6931472
        %v2960 = vlog2.pop %v2897
        %v2961 = vmul.f32 %v2960, 0.6931472
        %v2962 = vlog2.pop %v2899
        %v2963 = vmul.f32 %v2962, 0.6931472
        %v2964 = vlog2.pop %v2901
        %v2965 = vmul.f32 %v2964, 0.6931472
        %v2966 = vlog2.pop %v2903
        %v2967 = vmul.f32 %v2966, 0.6931472
        %v2968 = vlog2.pop %v2905
        %v2969 = vmul.f32 %v2968, 0.6931472
        %v2970 = vlog2.pop %v2907
        %v2971 = vmul.f32 %v2970, 0.6931472
        %v2972 = vlog2.pop %v2909
        %v2973 = vmul.f32 %v2972, 0.6931472
        %v2974 = vlog2.pop %v2911
        %v2975 = vmul.f32 %v2974, 0.6931472
        %v2976 = vlog2.pop %v2913
        %v2977 = vmul.f32 %v2976, 0.6931472
        %v2978 = vlog2.pop %v2915
        %v2979 = vmul.f32 %v2978, 0.6931472
        %v2980 = vlog2.pop %v2917
        %v2981 = vmul.f32 %v2980, 0.6931472
        %v2982 = vlog2.pop %v2919
        %v2983 = vmul.f32 %v2982, 0.6931472
        %v2984 = vlog2.pop %v2921
        %v2985 = vmul.f32 %v2984, 0.6931472
        %v2986 = vlog2.pop %v2923
        %v2987 = vmul.f32 %v2986, 0.6931472
        %v2988 = vlog2.pop %v2925
        %v2989 = vmul.f32 %v2988, 0.6931472
        %v2990 = vlog2.pop %v2927
        %v2991 = vmul.f32 %v2990, 0.6931472
        %v2992 = vlog2.pop %v2929
        %v2993 = vmul.f32 %v2992, 0.6931472
        %v2994 = vlog2.pop %v2931
        %v2995 = vmul.f32 %v2994, 0.6931472
        %v2996 = vlog2.pop %v2933
        %v2997 = vmul.f32 %v2996, 0.6931472
        %v2998 = vlog2.pop %v2935
        %v2999 = vmul.f32 %v2998, 0.6931472
        %v3000 = vlog2.pop %v2937
        %v3001 = vmul.f32 %v3000, 0.6931472
        %v3002 = vlog2.pop %v2939
        %v3003 = vmul.f32 %v3002, 0.6931472
        %v3004 = vlog2.pop %v2941
        %v3005 = vmul.f32 %v3004, 0.6931472
        %v3006 = vlog2.pop %v2943
        %v3007 = vmul.f32 %v3006, 0.6931472
        %v3008 = vlog2.pop %v2945
        %v3009 = vmul.f32 %v3008, 0.6931472
        %v3010 = vsub.f32 %v2786, %v2947
        %v3011 = vsub.f32 %v2787, %v2949
        %v3012 = vsub.f32 %v2788, %v2951
        %v3013 = vsub.f32 %v2789, %v2953
        %v3014 = vsub.f32 %v2790, %v2955
        %v3015 = vsub.f32 %v2791, %v2957
        %v3016 = vsub.f32 %v2792, %v2959
        %v3017 = vsub.f32 %v2793, %v2961
        %v3018 = vsub.f32 %v2794, %v2963
        %v3019 = vsub.f32 %v2795, %v2965
        %v3020 = vsub.f32 %v2796, %v2967
        %v3021 = vsub.f32 %v2797, %v2969
        %v3022 = vsub.f32 %v2798, %v2971
        %v3023 = vsub.f32 %v2799, %v2973
        %v3024 = vsub.f32 %v2800, %v2975
        %v3025 = vsub.f32 %v2801, %v2977
        %v3026 = vsub.f32 %v2802, %v2979
        %v3027 = vsub.f32 %v2803, %v2981
        %v3028 = vsub.f32 %v2804, %v2983
        %v3029 = vsub.f32 %v2805, %v2985
        %v3030 = vsub.f32 %v2806, %v2987
        %v3031 = vsub.f32 %v2807, %v2989
        %v3032 = vsub.f32 %v2808, %v2991
        %v3033 = vsub.f32 %v2809, %v2993
        %v3034 = vsub.f32 %v2810, %v2995
        %v3035 = vsub.f32 %v2811, %v2997
        %v3036 = vsub.f32 %v2812, %v2999
        %v3037 = vsub.f32 %v2813, %v3001
        %v3038 = vsub.f32 %v2814, %v3003
        %v3039 = vsub.f32 %v2815, %v3005
        %v3040 = vsub.f32 %v2816, %v3007
        %v3041 = vsub.f32 %v2817, %v3009
        %3042 = vst [vmem:[%s378] sm:$0xff] %v3010
        %3043 = vst [vmem:[%s378 + $0x8] sm:$0xff] %v3011
        %3044 = vst [vmem:[%s378 + $0x10] sm:$0xff] %v3012
        %3045 = vst [vmem:[%s378 + $0x18] sm:$0xff] %v3013
        %3046 = vst [vmem:[%s378 + $0x20] sm:$0xff] %v3014
        %3047 = vst [vmem:[%s378 + $0x28] sm:$0xff] %v3015
        %3048 = vst [vmem:[%s378 + $0x30] sm:$0xff] %v3016
        %3049 = vst [vmem:[%s378 + $0x38] sm:$0xff] %v3017
        %3050 = vst [vmem:[%s378 + $0x40] sm:$0xff] %v3018
        %3051 = vst [vmem:[%s378 + $0x48] sm:$0xff] %v3019
        %3052 = vst [vmem:[%s378 + $0x50] sm:$0xff] %v3020
        %3053 = vst [vmem:[%s378 + $0x58] sm:$0xff] %v3021
        %3054 = vst [vmem:[%s378 + $0x60] sm:$0xff] %v3022
        %3055 = vst [vmem:[%s378 + $0x68] sm:$0xff] %v3023
        %3056 = vst [vmem:[%s378 + $0x70] sm:$0xff] %v3024
        %3057 = vst [vmem:[%s378 + $0x78] sm:$0xff] %v3025
        %3058 = vst [vmem:[%s378 + $0x80] sm:$0xff] %v3026
        %3059 = vst [vmem:[%s378 + $0x88] sm:$0xff] %v3027
        %3060 = vst [vmem:[%s378 + $0x90] sm:$0xff] %v3028
        %3061 = vst [vmem:[%s378 + $0x98] sm:$0xff] %v3029
        %3062 = vst [vmem:[%s378 + $0xa0] sm:$0xff] %v3030
        %3063 = vst [vmem:[%s378 + $0xa8] sm:$0xff] %v3031
        %3064 = vst [vmem:[%s378 + $0xb0] sm:$0xff] %v3032
        %3065 = vst [vmem:[%s378 + $0xb8] sm:$0xff] %v3033
        %3066 = vst [vmem:[%s378 + $0xc0] sm:$0xff] %v3034
        %3067 = vst [vmem:[%s378 + $0xc8] sm:$0xff] %v3035
        %3068 = vst [vmem:[%s378 + $0xd0] sm:$0xff] %v3036
        %3069 = vst [vmem:[%s378 + $0xd8] sm:$0xff] %v3037
        %3070 = vst [vmem:[%s378 + $0xe0] sm:$0xff] %v3038
        %3071 = vst [vmem:[%s378 + $0xe8] sm:$0xff] %v3039
        %3072 = vst [vmem:[%s378 + $0xf0] sm:$0xff] %v3040
        %3073 = vst [vmem:[%s378 + $0xf8] sm:$0xff] %v3041
        %s3074 = sand.u32 %s187, 1
        %s3075 = scalar_lea.sflag [#allocation4], %s3074
        %s3076 = sand.u32 %s187, 1
        %s3077 = smul.addr %s3076, 256
        %s3078 = scalar_lea.vmem [#allocation14], %s3077
        // Predicated region
        $region77: #{model_a_forward.1} parent=47 // pred_check
          %p3079 = pneg %p197
        $region78: #{model_a_forward.1} parent=47 // pred_check_branch
          %3081 = sbr.rel (%p3079) target = $region80
        $region79: #{model_a_forward.1} parent=47 // pred_region
          %s3082 = smul.u32 32, %s27
          %s3084 = ssub.s32 4096, 4096
          %3085 = vsyncadd %s3075, %s3084
          %s3086 = smul.addr %s3082, 128
          %s3087 = scalar_lea.hbm %s7, %s3086
          %s3088 = sshll.u32 %s3078, 4
          %s3089 = int_to_ptr.vmem [resolvable:$true] %s3088
          %3094 = dma.vmem_to_hbm [thread:$0]  %s3089, 4096, %s3087, %s3075, 128, 128, 8
        $region80: #{model_a_forward.1} parent=47 // pred_fallthru
          _
      $region48: #{model_a_forward.1} parent=5 // pred_fallthru
        _
      %p3095 = scmp.le.s32.totalorder 2, %s22
      // Predicated region
      $region81: #{model_a_forward.1} parent=5 // pred_check
        %p3096 = pneg %p3095
      $region82: #{model_a_forward.1} parent=5 // pred_check_branch
        %3098 = sbr.rel (%p3096) target = $region84
      $region83: #{model_a_forward.1} parent=5 // pred_region
        %s3099 = ssub.s32 %s22, 2
        // Predicated region
        $region85: #{model_a_forward.1} parent=83 // pred_check
          %p3100 = pneg %p203
        $region86: #{model_a_forward.1} parent=83 // pred_check_branch
          %3102 = sbr.rel (%p3100) target = $region88
        $region87: #{model_a_forward.1} parent=83 // pred_region
          %s3103 = sand.u32 %s188, 1
          %s3104 = scalar_lea.sflag [#allocation4], %s3103
          %s3105 = sand.u32 %s188, 1
          %s3106 = smul.addr %s3105, 256
          %s3107 = scalar_lea.vmem [#allocation14], %s3106
          %3108 = dma.done %s3104, 4096
        $region88: #{model_a_forward.1} parent=83 // pred_fallthru
          _
      $region84: #{model_a_forward.1} parent=5 // pred_fallthru
        _
    $region6: #{model_a_forward.1} parent=1 // loop_footer
      %s26 = sadd.s32 1, %s22
    $region7: #{model_a_forward.1} parent=1 // loop_footer_branch
      %21 = sbr.rel target = $region3
    $region8: #{model_a_forward.1} parent=1 // loop_exit
      _
    %3109 = vsyncpa [#allocation3], 1
    %s3110 = scalar_lea.sflag [#allocation3], 1
    %3111 = vsyncpa %s3110, 1
    %3112 = vsyncpa [#allocation6], 1
    %3113 = vsyncpa [#allocation9], 1
    %3114 = vsyncpa [#allocation12], 1
    %3115 = vsyncpa [#allocation4], 1
    %s3116 = scalar_lea.sflag [#allocation4], 1
    %3117 = vsyncpa %s3116, 1

</llo_original>
